<compile_context>
chip_gen: v5e
topology: v5e:2x2
jax: 0.10.0
libtpu: 0.0.40
codegen_flags: <defaults>
</compile_context>

<pallas_src>
import functools

import jax
import jax.numpy as jnp
from jax import lax
from jax.experimental import pallas as pl
from jax.experimental.pallas import tpu as pltpu


def _round_up(a, b):
    return (a + b - 1) // b * b


def _tpu_generation():
    """Best-effort TPU generation (5 for v5e, 6 for v6e, 7 for v7x, 0 if unknown)."""
    try:
        kind = jax.devices()[0].device_kind.lower()
    except Exception:
        return 0
    for g in (7, 6, 5, 4, 3, 2):
        if f"v{g}" in kind:
            return g
    return 0


def bf16_activations_supported():
    # v6e / v7x have bf16-capable VPU + EUP; on v5e a bf16 cast only adds work.
    return _tpu_generation() >= 6


def _mlp_kernel(x_ref, w1_ref, b1_ref, *refs, num_hidden_layers, act_dtype,
                use_mxu_first_layer, fori_threshold=8):
    """One batch tile of the full MLP, in transposed [features, batch] layout.

    x_ref : [in_dim, TM] f32     (batch on the lane axis)
    w1_ref: [H, in_dim]  f32     b1_ref: [H, 1] f32  (latent folded into b1_eff)
    refs  : (wh_ref [L,H,H], bh_ref [L,H,1],)?  wo_ref [out,H], bo_ref [out,1],
            o_ref [out, TM]
    Matmul accumulation is always f32; activations (and wh/wo) may be bf16.
    """
    if num_hidden_layers > 0:
        wh_ref, bh_ref, wo_ref, bo_ref, o_ref = refs
    else:
        wo_ref, bo_ref, o_ref = refs

    x = x_ref[...]                                                   # [in_dim, TM]
    if use_mxu_first_layer:
        # K=in_dim matmul: free filler on the (otherwise idle) MXU slot.
        pre = jnp.dot(w1_ref[...], x, preferred_element_type=jnp.float32) + b1_ref[...]
    else:
        # Fallback: in_dim broadcast FMAs on the VPU.
        w1 = w1_ref[...]
        pre = b1_ref[...] + w1[:, 0:1] * x[0:1, :]
        for d in range(1, x.shape[0]):                               # static unroll
            pre = pre + w1[:, d:d + 1] * x[d:d + 1, :]
    h = jnp.tanh(pre.astype(act_dtype))                              # bf16 tanh on v6e/v7x

    if num_hidden_layers > 0:
        def layer(w, b, hh):
            p = jnp.dot(w, hh, preferred_element_type=jnp.float32) + b
            return jnp.tanh(p.astype(act_dtype))                     # [H, TM]

        if num_hidden_layers >= fori_threshold:
            # Deep nets: bound live ranges / instruction footprint with a real loop.
            h = lax.fori_loop(0, num_hidden_layers,
                              lambda i, hh: layer(wh_ref[i], bh_ref[i], hh),
                              h, unroll=2)
        else:
            for i in range(num_hidden_layers):                       # short: unroll
                h = layer(wh_ref[i], bh_ref[i], h)

    out = jnp.dot(wo_ref[...], h, preferred_element_type=jnp.float32) + bo_ref[...]
    o_ref[...] = out.astype(o_ref.dtype)                             # lane-dense [out, TM]


def _run_pallas(x_t, w1_x, b1_eff, wh, bh, wo, bo, *, n_pad, tile, act_dtype,
                use_mxu_first_layer, single_buffer_weights, vmem_cap_bytes):
    in_dim = x_t.shape[0]
    hid = w1_x.shape[0]
    num_hidden = wh.shape[0]
    out_dim = wo.shape[0]
    grid = (n_pad // tile,)

    # Optional bf16 weights for the MXU-heavy layers (cast once, wrapper-side);
    # biases stay f32 (added to the f32 accumulator before the activation cast).
    wh_k = wh.astype(act_dtype)
    wo_k = wo.astype(act_dtype)

    def const_spec(shape):
        nd = len(shape)
        idx = lambda i, _nd=nd: (0,) * _nd                           # grid-invariant
        if single_buffer_weights:
            # Weights never change across grid steps: a second pipeline buffer is waste.
            return pl.BlockSpec(shape, idx, pipeline_mode=pl.Buffered(1))
        return pl.BlockSpec(shape, idx)

    in_specs = [pl.BlockSpec((in_dim, tile), lambda i: (0, i)),      # x tile (pipelined)
                const_spec((hid, in_dim)),                           # W1[:, :in_dim]
                const_spec((hid, 1))]                                # b1_eff
    operands = [x_t, w1_x, b1_eff]
    if num_hidden > 0:
        in_specs += [const_spec((num_hidden, hid, hid)),             # hidden Ws
                     const_spec((num_hidden, hid, 1))]               # hidden bs
        operands += [wh_k, bh]
    in_specs += [const_spec((out_dim, hid)), const_spec((out_dim, 1))]
    operands += [wo_k, bo]

    kernel = functools.partial(
        _mlp_kernel, num_hidden_layers=num_hidden, act_dtype=act_dtype,
        use_mxu_first_layer=use_mxu_first_layer)

    flops = 2 * n_pad * (in_dim * hid + num_hidden * hid * hid + hid * out_dim)
    transcendentals = n_pad * hid * (num_hidden + 1)
    weight_bytes = sum(int(a.size) * a.dtype.itemsize
                       for a in (w1_x, b1_eff, wh_k, bh, wo_k, bo))
    bytes_accessed = 4 * n_pad * (in_dim + out_dim) + weight_bytes

    # VMEM budget: weight buffers (x1 or x2) + double-buffered x/out tiles +
    # activation working set, with 2x headroom; clamped per-generation.
    buf_bytes = (weight_bytes * (1 if single_buffer_weights else 2)
                 + 2 * 4 * tile * (in_dim + out_dim)
                 + 4 * tile * hid * jnp.dtype(act_dtype).itemsize)
    vmem_limit = int(min(vmem_cap_bytes, max(32 << 20, 2 * buf_bytes)))

    return pl.pallas_call(
        kernel,
        out_shape=jax.ShapeDtypeStruct((out_dim, n_pad), jnp.float32),
        grid_spec=pltpu.PrefetchScalarGridSpec(
            num_scalar_prefetch=0,
            grid=grid,
            in_specs=in_specs,
            out_specs=pl.BlockSpec((out_dim, tile), lambda i: (0, i)),   # lane-dense
        ),
        compiler_params=pltpu.CompilerParams(
            dimension_semantics=("parallel",),
            vmem_limit_bytes=vmem_limit),
        cost_estimate=pl.CostEstimate(
            flops=flops, transcendentals=transcendentals,
            bytes_accessed=bytes_accessed),
    )(*operands)


def mad_pinn_forward(x, latent_vector, params, *, tile_m=None):
    """x: [N, in_dim] f32; latent_vector: [latent_size] f32.

    params (PyTorch [out_features, in_features] layout):
      w1 [H, in_dim+latent], b1 [H, 1], wh [L-2, H, H], bh [L-2, H, 1],
      wo [out_dim, H], bo [out_dim, 1].
    """
    n, in_dim = x.shape
    latent_size = latent_vector.shape[-1]

    gen = _tpu_generation()
    act_dtype = jnp.bfloat16 if bf16_activations_supported() else jnp.float32
    if tile_m is None:
        # v5e: amortize ~0.35us/grid-step overhead with bigger tiles; v6e/v7x: 1024.
        tile_m = 2048 if gen <= 5 else 1024
    # v7x has 2 TensorCores/chip; keep >= 2 'parallel' grid steps when N allows it.
    min_steps = 2 if gen >= 7 else 1
    vmem_cap = (48 << 20) if gen >= 7 else (96 << 20)

    # --- Glue (O(H) work): fold the constant latent columns into the bias. ---
    w1_x = params["w1"][:, :in_dim].astype(jnp.float32)              # [H, in_dim]
    b1_eff = (params["b1"].astype(jnp.float32)
              + params["w1"][:, in_dim:].astype(jnp.float32)
              @ latent_vector.reshape(latent_size, 1).astype(jnp.float32))  # [H, 1]

    # Transposed layout: batch on the lane (last) axis.
    x_t = x.T.astype(jnp.float32)                                    # [in_dim, N]

    # Tile/grid sizing (lane-aligned; padded lanes are zero-filled -> tanh-safe).
    tile_m = max(128, _round_up(tile_m, 128))
    if min_steps > 1:
        cap = max(128, _round_up(pl.cdiv(n, min_steps), 128))
        tile = min(tile_m, cap)
    else:
        tile = min(tile_m, _round_up(n, 128))
    n_pad = _round_up(n, tile)
    if n_pad != n:
        x_t = jnp.pad(x_t, ((0, 0), (0, n_pad - n)))                 # keep explicit pad

    common = dict(n_pad=n_pad, tile=tile, vmem_cap_bytes=vmem_cap)
    attempts = (
        dict(act_dtype=act_dtype, use_mxu_first_layer=True, single_buffer_weights=True),
        dict(act_dtype=act_dtype, use_mxu_first_layer=True, single_buffer_weights=False),
        dict(act_dtype=jnp.float32, use_mxu_first_layer=False, single_buffer_weights=False),
    )
    out_t, last_err = None, None
    for cfg in attempts:
        try:
            out_t = _run_pallas(x_t, w1_x, b1_eff, params["wh"], params["bh"],
                                params["wo"], params["bo"], **cfg, **common)
            break
        except Exception as e:    # older toolchain rejects Buffered(1)/bf16: degrade
            last_err = e
    if out_t is None:
        raise last_err

    return out_t[:, :n].T                                            # [N, out_dim]


def _torch_linear_init(key, fan_in, shape):
    """Deterministic analogue of nn.Linear default init: U(-1/sqrt(fan_in), +)."""
    bound = 1.0 / jnp.sqrt(jnp.float32(fan_in))
    return jax.random.uniform(key, shape, jnp.float32, minval=-bound, maxval=bound)


def make_params(key, in_dim, latent_size, hidden_dim, out_dim, num_layers):
    """Weights in PyTorch [out_features, in_features] layout; biases as columns."""
    d_in = in_dim + latent_size
    num_hidden = num_layers - 2
    keys = jax.random.split(key, 2 * num_layers)
    w1 = _torch_linear_init(keys[0], d_in, (hidden_dim, d_in))
    b1 = _torch_linear_init(keys[1], d_in, (hidden_dim, 1))
    if num_hidden > 0:
        wh = jnp.stack([
            _torch_linear_init(keys[2 + 2 * i], hidden_dim, (hidden_dim, hidden_dim))
            for i in range(num_hidden)])
        bh = jnp.stack([
            _torch_linear_init(keys[3 + 2 * i], hidden_dim, (hidden_dim, 1))
            for i in range(num_hidden)])
    else:
        wh = jnp.zeros((0, hidden_dim, hidden_dim), jnp.float32)
        bh = jnp.zeros((0, hidden_dim, 1), jnp.float32)
    wo = _torch_linear_init(keys[-2], hidden_dim, (out_dim, hidden_dim))
    bo = _torch_linear_init(keys[-1], hidden_dim, (out_dim, 1))
    return {"w1": w1, "b1": b1, "wh": wh, "bh": bh, "wo": wo, "bo": bo}


def reference_forward(x, latent_vector, params):
    """Pure-JAX reference matching the PyTorch forward."""
    n = x.shape[0]
    lat = jnp.broadcast_to(latent_vector.reshape(1, -1), (n, latent_vector.shape[-1]))
    h = jnp.concatenate([x, lat], axis=1)
    h = jnp.tanh(h @ params["w1"].T + params["b1"].T)
    for i in range(params["wh"].shape[0]):
        h = jnp.tanh(h @ params["wh"][i].T + params["bh"][i].T)
    return h @ params["wo"].T + params["bo"].T


if __name__ == "__main__":
    # hparams (synthetic, small): mad-pinn MLP on 2-D Burger coords (x, t).
    in_dim, latent_size, hidden_dim, out_dim, num_layers = 2, 6, 32, 1, 4
    num_pde_params = 3      # len(hparams.params)
    n_points = 256          # collocation points (batch)

    key = jax.random.PRNGKey(0)
    k_x, k_lat, k_par = jax.random.split(key, 3)

    x = jax.random.normal(k_x, (n_points, in_dim), jnp.float32)

    # latent_init = randn([len(params), latent_size]) / sqrt(latent_size)
    latent_table = jax.random.normal(
        k_lat, (num_pde_params, latent_size), jnp.float32
    ) / jnp.sqrt(jnp.float32(latent_size))
    latent_vector = latent_table[0]     # forward() receives one latent vector

    params = make_params(k_par, in_dim, latent_size, hidden_dim, out_dim, num_layers)

    out = mad_pinn_forward(x, latent_vector, params)
    out = jax.block_until_ready(out)

    ref = reference_forward(x, latent_vector, params)
    assert out.shape == (n_points, out_dim)
    # Tolerance depends on the generation-gated activation dtype (bf16 on v6e/v7x).
    if bf16_activations_supported():
        atol = rtol = 5e-2
    else:
        atol = rtol = 1e-5
    assert jnp.allclose(out, ref, atol=atol, rtol=rtol), "mismatch vs JAX reference"

    # TODO(synk): 'hyper-pinn' branch / set_weight() hypernetwork weight injection and
    # the num_layers < 2 variant are parameter-plumbing variants of the same MLP hot
    # path, not separate kernels.
    print("KERNEL_OK")
</pallas_src>

<mosaic_0001>
module attributes {stable_mosaic.version = 11 : i64} {
  func.func @_mlp_kernel(%arg0: i32, %arg1: memref<2x256xf32, #tpu.memory_space<vmem>>, %arg2: memref<32x2xf32, #tpu.memory_space<vmem>>, %arg3: memref<32x1xf32, #tpu.memory_space<vmem>>, %arg4: memref<2x32x32xf32, #tpu.memory_space<vmem>>, %arg5: memref<2x32x1xf32, #tpu.memory_space<vmem>>, %arg6: memref<1x32xf32, #tpu.memory_space<vmem>>, %arg7: memref<1x1xf32, #tpu.memory_space<vmem>>, %arg8: memref<1x256xf32, #tpu.memory_space<vmem>>) attributes {dimension_semantics = [#tpu.dimension_semantics<parallel>], iteration_bounds = array<i64: 1>, scalar_prefetch = 0 : i64, scratch_operands = 0 : i64, tpu.core_type = #tpu.core_type<tc>, window_params = [{transform_indices = @transform_0, window_bounds = array<i64: 2, 256>}, {pipeline_mode = #tpu.pipeline_mode<synchronous>, transform_indices = @transform_1, window_bounds = array<i64: 32, 2>}, {pipeline_mode = #tpu.pipeline_mode<synchronous>, transform_indices = @transform_2, window_bounds = array<i64: 32, 1>}, {pipeline_mode = #tpu.pipeline_mode<synchronous>, transform_indices = @transform_3, window_bounds = array<i64: 2, 32, 32>}, {pipeline_mode = #tpu.pipeline_mode<synchronous>, transform_indices = @transform_4, window_bounds = array<i64: 2, 32, 1>}, {pipeline_mode = #tpu.pipeline_mode<synchronous>, transform_indices = @transform_5, window_bounds = array<i64: 1, 32>}, {pipeline_mode = #tpu.pipeline_mode<synchronous>, transform_indices = @transform_6, window_bounds = array<i64: 1, 1>}, {transform_indices = @transform_7, window_bounds = array<i64: 1, 256>}]} {
    %c0 = arith.constant 0 : index
    %c0_0 = arith.constant 0 : index
    %0 = vector.load %arg1[%c0, %c0_0] : memref<2x256xf32, #tpu.memory_space<vmem>>, vector<2x256xf32>
    %c0_1 = arith.constant 0 : index
    %c0_2 = arith.constant 0 : index
    %1 = vector.load %arg2[%c0_1, %c0_2] : memref<32x2xf32, #tpu.memory_space<vmem>>, vector<32x2xf32>
    %cst = arith.constant dense<0.000000e+00> : vector<32x256xf32>
    %2 = tpu.matmul %1, %0, %cst {dimension_numbers = #tpu.dot_dimension_numbers<[1], [0], [0], [1], [0, 0, 1, 1], [], []>} : vector<32x2xf32>, vector<2x256xf32>, vector<32x256xf32> -> vector<32x256xf32>
    %c0_3 = arith.constant 0 : index
    %c0_4 = arith.constant 0 : index
    %3 = vector.load %arg3[%c0_3, %c0_4] : memref<32x1xf32, #tpu.memory_space<vmem>>, vector<32x1xf32>
    %4 = vector.broadcast %3 : vector<32x1xf32> to vector<32x256xf32>
    %5 = arith.addf %2, %4 : vector<32x256xf32>
    %6 = math.tanh %5 : vector<32x256xf32>
    %c0_5 = arith.constant 0 : index
    %c0_6 = arith.constant 0 : index
    %c0_7 = arith.constant 0 : index
    %7 = vector.load %arg4[%c0_5, %c0_6, %c0_7] : memref<2x32x32xf32, #tpu.memory_space<vmem>>, vector<1x32x32xf32>
    %8 = vector.shape_cast %7 : vector<1x32x32xf32> to vector<32x32xf32>
    %c0_8 = arith.constant 0 : index
    %c0_9 = arith.constant 0 : index
    %c0_10 = arith.constant 0 : index
    %9 = vector.load %arg5[%c0_8, %c0_9, %c0_10] : memref<2x32x1xf32, #tpu.memory_space<vmem>>, vector<1x32x1xf32>
    %10 = vector.shape_cast %9 : vector<1x32x1xf32> to vector<32x1xf32>
    %cst_11 = arith.constant dense<0.000000e+00> : vector<32x256xf32>
    %11 = tpu.matmul %8, %6, %cst_11 {dimension_numbers = #tpu.dot_dimension_numbers<[1], [0], [0], [1], [0, 0, 1, 1], [], []>} : vector<32x32xf32>, vector<32x256xf32>, vector<32x256xf32> -> vector<32x256xf32>
    %12 = vector.broadcast %10 : vector<32x1xf32> to vector<32x256xf32>
    %13 = arith.addf %11, %12 : vector<32x256xf32>
    %14 = math.tanh %13 : vector<32x256xf32>
    %c1 = arith.constant 1 : index
    %c0_12 = arith.constant 0 : index
    %c0_13 = arith.constant 0 : index
    %15 = vector.load %arg4[%c1, %c0_12, %c0_13] : memref<2x32x32xf32, #tpu.memory_space<vmem>>, vector<1x32x32xf32>
    %16 = vector.shape_cast %15 : vector<1x32x32xf32> to vector<32x32xf32>
    %c1_14 = arith.constant 1 : index
    %c0_15 = arith.constant 0 : index
    %c0_16 = arith.constant 0 : index
    %17 = vector.load %arg5[%c1_14, %c0_15, %c0_16] : memref<2x32x1xf32, #tpu.memory_space<vmem>>, vector<1x32x1xf32>
    %18 = vector.shape_cast %17 : vector<1x32x1xf32> to vector<32x1xf32>
    %cst_17 = arith.constant dense<0.000000e+00> : vector<32x256xf32>
    %19 = tpu.matmul %16, %14, %cst_17 {dimension_numbers = #tpu.dot_dimension_numbers<[1], [0], [0], [1], [0, 0, 1, 1], [], []>} : vector<32x32xf32>, vector<32x256xf32>, vector<32x256xf32> -> vector<32x256xf32>
    %20 = vector.broadcast %18 : vector<32x1xf32> to vector<32x256xf32>
    %21 = arith.addf %19, %20 : vector<32x256xf32>
    %22 = math.tanh %21 : vector<32x256xf32>
    %c0_18 = arith.constant 0 : index
    %c0_19 = arith.constant 0 : index
    %23 = vector.load %arg6[%c0_18, %c0_19] : memref<1x32xf32, #tpu.memory_space<vmem>>, vector<1x32xf32>
    %cst_20 = arith.constant dense<0.000000e+00> : vector<1x256xf32>
    %24 = tpu.matmul %23, %22, %cst_20 {dimension_numbers = #tpu.dot_dimension_numbers<[1], [0], [0], [1], [0, 0, 1, 1], [], []>} : vector<1x32xf32>, vector<32x256xf32>, vector<1x256xf32> -> vector<1x256xf32>
    %c0_21 = arith.constant 0 : index
    %c0_22 = arith.constant 0 : index
    %25 = vector.load %arg7[%c0_21, %c0_22] : memref<1x1xf32, #tpu.memory_space<vmem>>, vector<1x1xf32>
    %26 = vector.broadcast %25 : vector<1x1xf32> to vector<1x256xf32>
    %27 = arith.addf %24, %26 : vector<1x256xf32>
    %c0_23 = arith.constant 0 : index
    %c0_24 = arith.constant 0 : index
    %28 = vector.load %arg8[%c0_23, %c0_24] : memref<1x256xf32, #tpu.memory_space<vmem>>, vector<1x256xf32>
    tpu.vector_store %arg8[%c0_23, %c0_24], %27 {strides = array<i32>} : memref<1x256xf32, #tpu.memory_space<vmem>>, vector<1x256xf32>,
    return
  }
  func.func @transform_0(%arg0: i32) -> (i32, i32) {
    %c0_i32 = arith.constant 0 : i32
    %c0_i32_0 = arith.constant 0 : i32
    return %c0_i32, %arg0 : i32, i32
  }
  func.func @transform_1(%arg0: i32) -> (i32, i32) {
    %c0_i32 = arith.constant 0 : i32
    %c0_i32_0 = arith.constant 0 : i32
    %c0_i32_1 = arith.constant 0 : i32
    return %c0_i32, %c0_i32_0 : i32, i32
  }
  func.func @transform_2(%arg0: i32) -> (i32, i32) {
    %c0_i32 = arith.constant 0 : i32
    %c0_i32_0 = arith.constant 0 : i32
    %c0_i32_1 = arith.constant 0 : i32
    return %c0_i32, %c0_i32_0 : i32, i32
  }
  func.func @transform_3(%arg0: i32) -> (i32, i32, i32) {
    %c0_i32 = arith.constant 0 : i32
    %c0_i32_0 = arith.constant 0 : i32
    %c0_i32_1 = arith.constant 0 : i32
    %c0_i32_2 = arith.constant 0 : i32
    return %c0_i32, %c0_i32_0, %c0_i32_1 : i32, i32, i32
  }
  func.func @transform_4(%arg0: i32) -> (i32, i32, i32) {
    %c0_i32 = arith.constant 0 : i32
    %c0_i32_0 = arith.constant 0 : i32
    %c0_i32_1 = arith.constant 0 : i32
    %c0_i32_2 = arith.constant 0 : i32
    return %c0_i32, %c0_i32_0, %c0_i32_1 : i32, i32, i32
  }
  func.func @transform_5(%arg0: i32) -> (i32, i32) {
    %c0_i32 = arith.constant 0 : i32
    %c0_i32_0 = arith.constant 0 : i32
    %c0_i32_1 = arith.constant 0 : i32
    return %c0_i32, %c0_i32_0 : i32, i32
  }
  func.func @transform_6(%arg0: i32) -> (i32, i32) {
    %c0_i32 = arith.constant 0 : i32
    %c0_i32_0 = arith.constant 0 : i32
    %c0_i32_1 = arith.constant 0 : i32
    return %c0_i32, %c0_i32_0 : i32, i32
  }
  func.func @transform_7(%arg0: i32) -> (i32, i32) {
    %c0_i32 = arith.constant 0 : i32
    %c0_i32_0 = arith.constant 0 : i32
    return %c0_i32, %arg0 : i32, i32
  }
}

module attributes {stable_mosaic.version = 11 : i64} {
  func.func @_mlp_kernel(%arg0: i32, %arg1: memref<2x256xf32, #tpu.memory_space<vmem>>, %arg2: memref<32x2xf32, #tpu.memory_space<vmem>>, %arg3: memref<32x1xf32, #tpu.memory_space<vmem>>, %arg4: memref<2x32x32xf32, #tpu.memory_space<vmem>>, %arg5: memref<2x32x1xf32, #tpu.memory_space<vmem>>, %arg6: memref<1x32xf32, #tpu.memory_space<vmem>>, %arg7: memref<1x1xf32, #tpu.memory_space<vmem>>, %arg8: memref<1x256xf32, #tpu.memory_space<vmem>>) attributes {dimension_semantics = [#tpu.dimension_semantics<parallel>], iteration_bounds = array<i64: 1>, scalar_prefetch = 0 : i64, scratch_operands = 0 : i64, tpu.core_type = #tpu.core_type<tc>, window_params = [{transform_indices = @transform_0, window_bounds = array<i64: 2, 256>}, {pipeline_mode = #tpu.pipeline_mode<synchronous>, transform_indices = @transform_1, window_bounds = array<i64: 32, 2>}, {pipeline_mode = #tpu.pipeline_mode<synchronous>, transform_indices = @transform_2, window_bounds = array<i64: 32, 1>}, {pipeline_mode = #tpu.pipeline_mode<synchronous>, transform_indices = @transform_3, window_bounds = array<i64: 2, 32, 32>}, {pipeline_mode = #tpu.pipeline_mode<synchronous>, transform_indices = @transform_4, window_bounds = array<i64: 2, 32, 1>}, {pipeline_mode = #tpu.pipeline_mode<synchronous>, transform_indices = @transform_5, window_bounds = array<i64: 1, 32>}, {pipeline_mode = #tpu.pipeline_mode<synchronous>, transform_indices = @transform_6, window_bounds = array<i64: 1, 1>}, {transform_indices = @transform_7, window_bounds = array<i64: 1, 256>}]} {
    %c0 = arith.constant 0 : index
    %c0_0 = arith.constant 0 : index
    %0 = vector.load %arg1[%c0, %c0_0] : memref<2x256xf32, #tpu.memory_space<vmem>>, vector<2x256xf32>
    %c0_1 = arith.constant 0 : index
    %c0_2 = arith.constant 0 : index
    %1 = vector.load %arg2[%c0_1, %c0_2] : memref<32x2xf32, #tpu.memory_space<vmem>>, vector<32x2xf32>
    %cst = arith.constant dense<0.000000e+00> : vector<32x256xf32>
    %2 = tpu.matmul %1, %0, %cst {dimension_numbers = #tpu.dot_dimension_numbers<[1], [0], [0], [1], [0, 0, 1, 1], [], []>} : vector<32x2xf32>, vector<2x256xf32>, vector<32x256xf32> -> vector<32x256xf32>
    %c0_3 = arith.constant 0 : index
    %c0_4 = arith.constant 0 : index
    %3 = vector.load %arg3[%c0_3, %c0_4] : memref<32x1xf32, #tpu.memory_space<vmem>>, vector<32x1xf32>
    %4 = vector.broadcast %3 : vector<32x1xf32> to vector<32x256xf32>
    %5 = arith.addf %2, %4 : vector<32x256xf32>
    %6 = math.tanh %5 : vector<32x256xf32>
    %c0_5 = arith.constant 0 : index
    %c0_6 = arith.constant 0 : index
    %c0_7 = arith.constant 0 : index
    %7 = vector.load %arg4[%c0_5, %c0_6, %c0_7] : memref<2x32x32xf32, #tpu.memory_space<vmem>>, vector<1x32x32xf32>
    %8 = vector.shape_cast %7 : vector<1x32x32xf32> to vector<32x32xf32>
    %c0_8 = arith.constant 0 : index
    %c0_9 = arith.constant 0 : index
    %c0_10 = arith.constant 0 : index
    %9 = vector.load %arg5[%c0_8, %c0_9, %c0_10] : memref<2x32x1xf32, #tpu.memory_space<vmem>>, vector<1x32x1xf32>
    %10 = vector.shape_cast %9 : vector<1x32x1xf32> to vector<32x1xf32>
    %cst_11 = arith.constant dense<0.000000e+00> : vector<32x256xf32>
    %11 = tpu.matmul %8, %6, %cst_11 {dimension_numbers = #tpu.dot_dimension_numbers<[1], [0], [0], [1], [0, 0, 1, 1], [], []>} : vector<32x32xf32>, vector<32x256xf32>, vector<32x256xf32> -> vector<32x256xf32>
    %12 = vector.broadcast %10 : vector<32x1xf32> to vector<32x256xf32>
    %13 = arith.addf %11, %12 : vector<32x256xf32>
    %14 = math.tanh %13 : vector<32x256xf32>
    %c1 = arith.constant 1 : index
    %c0_12 = arith.constant 0 : index
    %c0_13 = arith.constant 0 : index
    %15 = vector.load %arg4[%c1, %c0_12, %c0_13] : memref<2x32x32xf32, #tpu.memory_space<vmem>>, vector<1x32x32xf32>
    %16 = vector.shape_cast %15 : vector<1x32x32xf32> to vector<32x32xf32>
    %c1_14 = arith.constant 1 : index
    %c0_15 = arith.constant 0 : index
    %c0_16 = arith.constant 0 : index
    %17 = vector.load %arg5[%c1_14, %c0_15, %c0_16] : memref<2x32x1xf32, #tpu.memory_space<vmem>>, vector<1x32x1xf32>
    %18 = vector.shape_cast %17 : vector<1x32x1xf32> to vector<32x1xf32>
    %cst_17 = arith.constant dense<0.000000e+00> : vector<32x256xf32>
    %19 = tpu.matmul %16, %14, %cst_17 {dimension_numbers = #tpu.dot_dimension_numbers<[1], [0], [0], [1], [0, 0, 1, 1], [], []>} : vector<32x32xf32>, vector<32x256xf32>, vector<32x256xf32> -> vector<32x256xf32>
    %20 = vector.broadcast %18 : vector<32x1xf32> to vector<32x256xf32>
    %21 = arith.addf %19, %20 : vector<32x256xf32>
    %22 = math.tanh %21 : vector<32x256xf32>
    %c0_18 = arith.constant 0 : index
    %c0_19 = arith.constant 0 : index
    %23 = vector.load %arg6[%c0_18, %c0_19] : memref<1x32xf32, #tpu.memory_space<vmem>>, vector<1x32xf32>
    %cst_20 = arith.constant dense<0.000000e+00> : vector<1x256xf32>
    %24 = tpu.matmul %23, %22, %cst_20 {dimension_numbers = #tpu.dot_dimension_numbers<[1], [0], [0], [1], [0, 0, 1, 1], [], []>} : vector<1x32xf32>, vector<32x256xf32>, vector<1x256xf32> -> vector<1x256xf32>
    %c0_21 = arith.constant 0 : index
    %c0_22 = arith.constant 0 : index
    %25 = vector.load %arg7[%c0_21, %c0_22] : memref<1x1xf32, #tpu.memory_space<vmem>>, vector<1x1xf32>
    %26 = vector.broadcast %25 : vector<1x1xf32> to vector<1x256xf32>
    %27 = arith.addf %24, %26 : vector<1x256xf32>
    %c0_23 = arith.constant 0 : index
    %c0_24 = arith.constant 0 : index
    %28 = vector.load %arg8[%c0_23, %c0_24] : memref<1x256xf32, #tpu.memory_space<vmem>>, vector<1x256xf32>
    tpu.vector_store %arg8[%c0_23, %c0_24], %27 {strides = array<i32>} : memref<1x256xf32, #tpu.memory_space<vmem>>, vector<1x256xf32>,
    return
  }
  func.func @transform_0(%arg0: i32) -> (i32, i32) {
    %c0_i32 = arith.constant 0 : i32
    %c0_i32_0 = arith.constant 0 : i32
    return %c0_i32, %arg0 : i32, i32
  }
  func.func @transform_1(%arg0: i32) -> (i32, i32) {
    %c0_i32 = arith.constant 0 : i32
    %c0_i32_0 = arith.constant 0 : i32
    %c0_i32_1 = arith.constant 0 : i32
    return %c0_i32, %c0_i32_0 : i32, i32
  }
  func.func @transform_2(%arg0: i32) -> (i32, i32) {
    %c0_i32 = arith.constant 0 : i32
    %c0_i32_0 = arith.constant 0 : i32
    %c0_i32_1 = arith.constant 0 : i32
    return %c0_i32, %c0_i32_0 : i32, i32
  }
  func.func @transform_3(%arg0: i32) -> (i32, i32, i32) {
    %c0_i32 = arith.constant 0 : i32
    %c0_i32_0 = arith.constant 0 : i32
    %c0_i32_1 = arith.constant 0 : i32
    %c0_i32_2 = arith.constant 0 : i32
    return %c0_i32, %c0_i32_0, %c0_i32_1 : i32, i32, i32
  }
  func.func @transform_4(%arg0: i32) -> (i32, i32, i32) {
    %c0_i32 = arith.constant 0 : i32
    %c0_i32_0 = arith.constant 0 : i32
    %c0_i32_1 = arith.constant 0 : i32
    %c0_i32_2 = arith.constant 0 : i32
    return %c0_i32, %c0_i32_0, %c0_i32_1 : i32, i32, i32
  }
  func.func @transform_5(%arg0: i32) -> (i32, i32) {
    %c0_i32 = arith.constant 0 : i32
    %c0_i32_0 = arith.constant 0 : i32
    %c0_i32_1 = arith.constant 0 : i32
    return %c0_i32, %c0_i32_0 : i32, i32
  }
  func.func @transform_6(%arg0: i32) -> (i32, i32) {
    %c0_i32 = arith.constant 0 : i32
    %c0_i32_0 = arith.constant 0 : i32
    %c0_i32_1 = arith.constant 0 : i32
    return %c0_i32, %c0_i32_0 : i32, i32
  }
  func.func @transform_7(%arg0: i32) -> (i32, i32) {
    %c0_i32 = arith.constant 0 : i32
    %c0_i32_0 = arith.constant 0 : i32
    return %c0_i32, %arg0 : i32, i32
  }
}

module attributes {stable_mosaic.version = 11 : i64} {
  func.func @_mlp_kernel(%arg0: i32, %arg1: memref<2x256xf32, #tpu.memory_space<vmem>>, %arg2: memref<32x2xf32, #tpu.memory_space<vmem>>, %arg3: memref<32x1xf32, #tpu.memory_space<vmem>>, %arg4: memref<2x32x32xf32, #tpu.memory_space<vmem>>, %arg5: memref<2x32x1xf32, #tpu.memory_space<vmem>>, %arg6: memref<1x32xf32, #tpu.memory_space<vmem>>, %arg7: memref<1x1xf32, #tpu.memory_space<vmem>>, %arg8: memref<1x256xf32, #tpu.memory_space<vmem>>) attributes {dimension_semantics = [#tpu.dimension_semantics<parallel>], iteration_bounds = array<i64: 1>, scalar_prefetch = 0 : i64, scratch_operands = 0 : i64, tpu.core_type = #tpu.core_type<tc>, window_params = [{transform_indices = @transform_0, window_bounds = array<i64: 2, 256>}, {pipeline_mode = #tpu.pipeline_mode<synchronous>, transform_indices = @transform_1, window_bounds = array<i64: 32, 2>}, {pipeline_mode = #tpu.pipeline_mode<synchronous>, transform_indices = @transform_2, window_bounds = array<i64: 32, 1>}, {pipeline_mode = #tpu.pipeline_mode<synchronous>, transform_indices = @transform_3, window_bounds = array<i64: 2, 32, 32>}, {pipeline_mode = #tpu.pipeline_mode<synchronous>, transform_indices = @transform_4, window_bounds = array<i64: 2, 32, 1>}, {pipeline_mode = #tpu.pipeline_mode<synchronous>, transform_indices = @transform_5, window_bounds = array<i64: 1, 32>}, {pipeline_mode = #tpu.pipeline_mode<synchronous>, transform_indices = @transform_6, window_bounds = array<i64: 1, 1>}, {transform_indices = @transform_7, window_bounds = array<i64: 1, 256>}]} {
    %c0 = arith.constant 0 : index
    %c0_0 = arith.constant 0 : index
    %0 = vector.load %arg1[%c0, %c0_0] : memref<2x256xf32, #tpu.memory_space<vmem>>, vector<2x256xf32>
    %c0_1 = arith.constant 0 : index
    %c0_2 = arith.constant 0 : index
    %1 = vector.load %arg2[%c0_1, %c0_2] : memref<32x2xf32, #tpu.memory_space<vmem>>, vector<32x2xf32>
    %c0_3 = arith.constant 0 : index
    %c0_4 = arith.constant 0 : index
    %2 = vector.load %arg3[%c0_3, %c0_4] : memref<32x1xf32, #tpu.memory_space<vmem>>, vector<32x1xf32>
    %3 = vector.extract_strided_slice %1 {offsets = [0, 0], sizes = [32, 1], strides = [1, 1]} : vector<32x2xf32> to vector<32x1xf32>
    %4 = vector.extract_strided_slice %0 {offsets = [0, 0], sizes = [1, 256], strides = [1, 1]} : vector<2x256xf32> to vector<1x256xf32>
    %5 = vector.broadcast %3 : vector<32x1xf32> to vector<32x256xf32>
    %6 = vector.broadcast %4 : vector<1x256xf32> to vector<32x256xf32>
    %7 = arith.mulf %5, %6 : vector<32x256xf32>
    %8 = vector.broadcast %2 : vector<32x1xf32> to vector<32x256xf32>
    %9 = arith.addf %8, %7 : vector<32x256xf32>
    %10 = vector.extract_strided_slice %1 {offsets = [0, 1], sizes = [32, 1], strides = [1, 1]} : vector<32x2xf32> to vector<32x1xf32>
    %11 = vector.extract_strided_slice %0 {offsets = [1, 0], sizes = [1, 256], strides = [1, 1]} : vector<2x256xf32> to vector<1x256xf32>
    %12 = vector.broadcast %10 : vector<32x1xf32> to vector<32x256xf32>
    %13 = vector.broadcast %11 : vector<1x256xf32> to vector<32x256xf32>
    %14 = arith.mulf %12, %13 : vector<32x256xf32>
    %15 = arith.addf %9, %14 : vector<32x256xf32>
    %16 = math.tanh %15 : vector<32x256xf32>
    %c0_5 = arith.constant 0 : index
    %c0_6 = arith.constant 0 : index
    %c0_7 = arith.constant 0 : index
    %17 = vector.load %arg4[%c0_5, %c0_6, %c0_7] : memref<2x32x32xf32, #tpu.memory_space<vmem>>, vector<1x32x32xf32>
    %18 = vector.shape_cast %17 : vector<1x32x32xf32> to vector<32x32xf32>
    %c0_8 = arith.constant 0 : index
    %c0_9 = arith.constant 0 : index
    %c0_10 = arith.constant 0 : index
    %19 = vector.load %arg5[%c0_8, %c0_9, %c0_10] : memref<2x32x1xf32, #tpu.memory_space<vmem>>, vector<1x32x1xf32>
    %20 = vector.shape_cast %19 : vector<1x32x1xf32> to vector<32x1xf32>
    %cst = arith.constant dense<0.000000e+00> : vector<32x256xf32>
    %21 = tpu.matmul %18, %16, %cst {dimension_numbers = #tpu.dot_dimension_numbers<[1], [0], [0], [1], [0, 0, 1, 1], [], []>} : vector<32x32xf32>, vector<32x256xf32>, vector<32x256xf32> -> vector<32x256xf32>
    %22 = vector.broadcast %20 : vector<32x1xf32> to vector<32x256xf32>
    %23 = arith.addf %21, %22 : vector<32x256xf32>
    %24 = math.tanh %23 : vector<32x256xf32>
    %c1 = arith.constant 1 : index
    %c0_11 = arith.constant 0 : index
    %c0_12 = arith.constant 0 : index
    %25 = vector.load %arg4[%c1, %c0_11, %c0_12] : memref<2x32x32xf32, #tpu.memory_space<vmem>>, vector<1x32x32xf32>
    %26 = vector.shape_cast %25 : vector<1x32x32xf32> to vector<32x32xf32>
    %c1_13 = arith.constant 1 : index
    %c0_14 = arith.constant 0 : index
    %c0_15 = arith.constant 0 : index
    %27 = vector.load %arg5[%c1_13, %c0_14, %c0_15] : memref<2x32x1xf32, #tpu.memory_space<vmem>>, vector<1x32x1xf32>
    %28 = vector.shape_cast %27 : vector<1x32x1xf32> to vector<32x1xf32>
    %cst_16 = arith.constant dense<0.000000e+00> : vector<32x256xf32>
    %29 = tpu.matmul %26, %24, %cst_16 {dimension_numbers = #tpu.dot_dimension_numbers<[1], [0], [0], [1], [0, 0, 1, 1], [], []>} : vector<32x32xf32>, vector<32x256xf32>, vector<32x256xf32> -> vector<32x256xf32>
    %30 = vector.broadcast %28 : vector<32x1xf32> to vector<32x256xf32>
    %31 = arith.addf %29, %30 : vector<32x256xf32>
    %32 = math.tanh %31 : vector<32x256xf32>
    %c0_17 = arith.constant 0 : index
    %c0_18 = arith.constant 0 : index
    %33 = vector.load %arg6[%c0_17, %c0_18] : memref<1x32xf32, #tpu.memory_space<vmem>>, vector<1x32xf32>
    %cst_19 = arith.constant dense<0.000000e+00> : vector<1x256xf32>
    %34 = tpu.matmul %33, %32, %cst_19 {dimension_numbers = #tpu.dot_dimension_numbers<[1], [0], [0], [1], [0, 0, 1, 1], [], []>} : vector<1x32xf32>, vector<32x256xf32>, vector<1x256xf32> -> vector<1x256xf32>
    %c0_20 = arith.constant 0 : index
    %c0_21 = arith.constant 0 : index
    %35 = vector.load %arg7[%c0_20, %c0_21] : memref<1x1xf32, #tpu.memory_space<vmem>>, vector<1x1xf32>
    %36 = vector.broadcast %35 : vector<1x1xf32> to vector<1x256xf32>
    %37 = arith.addf %34, %36 : vector<1x256xf32>
    %c0_22 = arith.constant 0 : index
    %c0_23 = arith.constant 0 : index
    %38 = vector.load %arg8[%c0_22, %c0_23] : memref<1x256xf32, #tpu.memory_space<vmem>>, vector<1x256xf32>
    tpu.vector_store %arg8[%c0_22, %c0_23], %37 {strides = array<i32>} : memref<1x256xf32, #tpu.memory_space<vmem>>, vector<1x256xf32>,
    return
  }
  func.func @transform_0(%arg0: i32) -> (i32, i32) {
    %c0_i32 = arith.constant 0 : i32
    %c0_i32_0 = arith.constant 0 : i32
    return %c0_i32, %arg0 : i32, i32
  }
  func.func @transform_1(%arg0: i32) -> (i32, i32) {
    %c0_i32 = arith.constant 0 : i32
    %c0_i32_0 = arith.constant 0 : i32
    %c0_i32_1 = arith.constant 0 : i32
    return %c0_i32, %c0_i32_0 : i32, i32
  }
  func.func @transform_2(%arg0: i32) -> (i32, i32) {
    %c0_i32 = arith.constant 0 : i32
    %c0_i32_0 = arith.constant 0 : i32
    %c0_i32_1 = arith.constant 0 : i32
    return %c0_i32, %c0_i32_0 : i32, i32
  }
  func.func @transform_3(%arg0: i32) -> (i32, i32, i32) {
    %c0_i32 = arith.constant 0 : i32
    %c0_i32_0 = arith.constant 0 : i32
    %c0_i32_1 = arith.constant 0 : i32
    %c0_i32_2 = arith.constant 0 : i32
    return %c0_i32, %c0_i32_0, %c0_i32_1 : i32, i32, i32
  }
  func.func @transform_4(%arg0: i32) -> (i32, i32, i32) {
    %c0_i32 = arith.constant 0 : i32
    %c0_i32_0 = arith.constant 0 : i32
    %c0_i32_1 = arith.constant 0 : i32
    %c0_i32_2 = arith.constant 0 : i32
    return %c0_i32, %c0_i32_0, %c0_i32_1 : i32, i32, i32
  }
  func.func @transform_5(%arg0: i32) -> (i32, i32) {
    %c0_i32 = arith.constant 0 : i32
    %c0_i32_0 = arith.constant 0 : i32
    %c0_i32_1 = arith.constant 0 : i32
    return %c0_i32, %c0_i32_0 : i32, i32
  }
  func.func @transform_6(%arg0: i32) -> (i32, i32) {
    %c0_i32 = arith.constant 0 : i32
    %c0_i32_0 = arith.constant 0 : i32
    %c0_i32_1 = arith.constant 0 : i32
    return %c0_i32, %c0_i32_0 : i32, i32
  }
  func.func @transform_7(%arg0: i32) -> (i32, i32) {
    %c0_i32 = arith.constant 0 : i32
    %c0_i32_0 = arith.constant 0 : i32
    return %c0_i32, %arg0 : i32, i32
  }
}

</mosaic_0001>

<llo_original>
// kernel: tpu_custom_call.1
$region0: #{tpu_custom_call.1}
  #allocation0 [shape = 'u32[]', space=smem, size = 0x4, offset = 0x4, fixed_abs, tag = 'smem constant byte address 0x4 - core index']
  #allocation1 [shape = 'u32[72,128]{1,0:T(1,128)}', space=vmem, size = 0x9000, scoped, tag = 'internal scratch']
  #allocation2 [shape = 'f32[1,1]{1,0:T(1,128)S(1)}', space=vmem, size = 0x200, scoped, tag = 'scoped memory for tpu_custom_call.1']
  %s0 = inlined_call_operand.vmem [shape: f32[2,256], index: 0, kind: input, shape index: {}]
  %s1 = inlined_call_operand.vmem [shape: f32[32,2], index: 1, kind: input, shape index: {}]
  %s2 = inlined_call_operand.vmem [shape: f32[32,1], index: 2, kind: input, shape index: {}]
  %s3 = inlined_call_operand.vmem [shape: f32[2,32,32], index: 3, kind: input, shape index: {}]
  %s4 = inlined_call_operand.vmem [shape: f32[2,32,1], index: 4, kind: input, shape index: {}]
  %s5 = inlined_call_operand.vmem [shape: f32[1,32], index: 5, kind: input, shape index: {}]
  %s6 = inlined_call_operand.<no memory space> [shape: f32[1,1], index: 6, kind: input, shape index: {}]
  %s7 = inlined_call_operand.hbm [shape: f32[1,256], index: 7, kind: output, shape index: {}]
  %s8 = sld [smem:[#allocation0]]
  $region38: #{tpu_custom_call.1} parent=0
    _
  %s10 = ssub.s32 1, %s8
  %s11 = scalar_select 0, %s10, %s8
  %v12 = vstv %s6
  %13 = vst [vmem:[#allocation2] sm:$0x1] %v12
  $region1: #{tpu_custom_call.1} parent=0
    #allocation3 [shape = 'u8[1024]{0}', space=vmem, size = 0x400, scoped, tag = 'output window, operand 0, single buffered']
    #allocation4 [shape = 's32[1]{0}', space=sflag, size = 0x4, scoped, tag = 'scoped memory for tpu_custom_call.1']
    %14 = vsyncpa [#allocation4], 0
    // Predicated region
    $region2: #{tpu_custom_call.1} parent=1 // pred_check
      _
    $region3: #{tpu_custom_call.1} parent=1 // pred_check_branch
      %16 = sbr.rel (0) target = $region5
    $region4: #{tpu_custom_call.1} parent=1 // pred_region
      _
    $region5: #{tpu_custom_call.1} parent=1 // pred_fallthru
      _
    // Predicated region
    $region6: #{tpu_custom_call.1} parent=1 // pred_check
      _
    $region7: #{tpu_custom_call.1} parent=1 // pred_check_branch
      %18 = sbr.rel (0) target = $region9
    $region8: #{tpu_custom_call.1} parent=1 // pred_region
      _
    $region9: #{tpu_custom_call.1} parent=1 // pred_fallthru
      _
    // Predicated region
    $region10: #{tpu_custom_call.1} parent=1 // pred_check
      _
    $region11: #{tpu_custom_call.1} parent=1 // pred_check_branch
      %20 = sbr.rel (0) target = $region13
    $region12: #{tpu_custom_call.1} parent=1 // pred_region
      _
    $region13: #{tpu_custom_call.1} parent=1 // pred_fallthru
      _
    // Predicated region
    $region14: #{tpu_custom_call.1} parent=1 // pred_check
      _
    $region15: #{tpu_custom_call.1} parent=1 // pred_check_branch
      %22 = sbr.rel (0) target = $region17
    $region16: #{tpu_custom_call.1} parent=1 // pred_region
      _
    $region17: #{tpu_custom_call.1} parent=1 // pred_fallthru
      _
    // Predicated region
    $region18: #{tpu_custom_call.1} parent=1 // pred_check
      _
    $region19: #{tpu_custom_call.1} parent=1 // pred_check_branch
      %24 = sbr.rel (0) target = $region21
    $region20: #{tpu_custom_call.1} parent=1 // pred_region
      _
    $region21: #{tpu_custom_call.1} parent=1 // pred_fallthru
      _
    // Predicated region
    $region22: #{tpu_custom_call.1} parent=1 // pred_check
      _
    $region23: #{tpu_custom_call.1} parent=1 // pred_check_branch
      %26 = sbr.rel (0) target = $region25
    $region24: #{tpu_custom_call.1} parent=1 // pred_region
      _
    $region25: #{tpu_custom_call.1} parent=1 // pred_fallthru
      _
    // Predicated region
    $region26: #{tpu_custom_call.1} parent=1 // pred_check
      _
    $region27: #{tpu_custom_call.1} parent=1 // pred_check_branch
      %28 = sbr.rel (0) target = $region29
    $region28: #{tpu_custom_call.1} parent=1 // pred_region
      _
    $region29: #{tpu_custom_call.1} parent=1 // pred_fallthru
      _
    %v29 = vld [vmem:[%s0] sm:$0xf]
    %v30 = vld [vmem:[%s1] sm:$0xff]
    %v31 = vld [vmem:[%s1 + $0x8] sm:$0xff]
    %v32 = vld [vmem:[%s1 + $0x10] sm:$0xff]
    %v33 = vld [vmem:[%s1 + $0x18] sm:$0xff]
    %v34 = vld [vmem:[%s2] sm:$0xff]
    %v35 = vld [vmem:[%s2 + $0x8] sm:$0xff]
    %v36 = vld [vmem:[%s2 + $0x10] sm:$0xff]
    %v37 = vld [vmem:[%s2 + $0x18] sm:$0xff]
    %39 = vset.pattern.permute.xlu0 0
    %40 = vperm.xlu0 %39, %v34
    %v41 = vpop.permute.xlu0 %40
    %44 = vset.pattern.permute.xlu0 0
    %45 = vperm.xlu0 %44, %v35
    %v46 = vpop.permute.xlu0 %45
    %49 = vset.pattern.permute.xlu0 0
    %50 = vperm.xlu0 %49, %v36
    %v51 = vpop.permute.xlu0 %50
    %54 = vset.pattern.permute.xlu0 0
    %55 = vperm.xlu0 %54, %v37
    %v56 = vpop.permute.xlu0 %55
    %59 = vst [vmem:[#allocation1] ss:$4 sm:$0xff] %v29
    %v60 = vld.sshfl [vmem:[#allocation1] sm:$0xff pattern:$0x73625140]
    %v61 = vld.sshfl [vmem:[#allocation1 + $0x8] sm:$0xff pattern:$0x73625140]
    %vm62 = vcmask 15360
    %v64 = vsel %vm62, %v30, 0
    %v67 = vsel %vm62, %v31, 0
    %v70 = vsel %vm62, %v32, 0
    %v73 = vsel %vm62, %v33, 0
    %vm75 = vcmask 1041408
    %v76 = vsel %vm75, %v60, 0
    %v78 = vsel %vm75, %v61, 0
    %80 = vmatpush.msra.mxu0 0.0
    %81 = vmatpush.msra.mxu0 0.0
    %82 = vmatpush.msra.mxu0 0.0
    %83 = vmatpush.msra.mxu0 0.0
    %84 = vmatpush.msra.mxu0 0.0
    %85 = vmatpush.msra.mxu0 0.0
    %86 = vmatpush.msra.mxu0 0.0
    %87 = vmatpush.msra.mxu0 0.0
    %88 = vmatpush.msra.mxu0 0.0
    %89 = vmatpush.msra.mxu0 0.0
    %90 = vmatpush.msra.mxu0 0.0
    %91 = vmatpush.msra.mxu0 0.0
    %92 = vmatpush.msra.mxu0 0.0
    %93 = vmatpush.msra.mxu0 0.0
    %94 = vmatpush.msra.mxu0 0.0
    %95 = vmatpush.msra.mxu0 %v76
    %96 = vmatmul.f32.gmra.mxu0 %v64
    %v97 = vpop.f32.mrf.mxu0
    %v98 = vadd.f32 %v41, %v97
    %99 = vmatmul.f32.gmra.mxu0 %v67
    %v100 = vpop.f32.mrf.mxu0
    %v101 = vadd.f32 %v46, %v100
    %102 = vmatmul.f32.gmra.mxu0 %v70
    %v103 = vpop.f32.mrf.mxu0
    %v104 = vadd.f32 %v51, %v103
    %105 = vmatmul.f32.gmra.mxu0 %v73
    %v106 = vpop.f32.mrf.mxu0
    %v107 = vadd.f32 %v56, %v106
    %108 = vdwg.mxu0
    %109 = vmatpush.msra.mxu0 0.0
    %110 = vmatpush.msra.mxu0 0.0
    %111 = vmatpush.msra.mxu0 0.0
    %112 = vmatpush.msra.mxu0 0.0
    %113 = vmatpush.msra.mxu0 0.0
    %114 = vmatpush.msra.mxu0 0.0
    %115 = vmatpush.msra.mxu0 0.0
    %116 = vmatpush.msra.mxu0 0.0
    %117 = vmatpush.msra.mxu0 0.0
    %118 = vmatpush.msra.mxu0 0.0
    %119 = vmatpush.msra.mxu0 0.0
    %120 = vmatpush.msra.mxu0 0.0
    %121 = vmatpush.msra.mxu0 0.0
    %122 = vmatpush.msra.mxu0 0.0
    %123 = vmatpush.msra.mxu0 0.0
    %124 = vmatpush.msra.mxu0 %v78
    %125 = vmatmul.f32.gmra.mxu0 %v64
    %v126 = vpop.f32.mrf.mxu0
    %v127 = vadd.f32 %v41, %v126
    %128 = vmatmul.f32.gmra.mxu0 %v67
    %v129 = vpop.f32.mrf.mxu0
    %v130 = vadd.f32 %v46, %v129
    %131 = vmatmul.f32.gmra.mxu0 %v70
    %v132 = vpop.f32.mrf.mxu0
    %v133 = vadd.f32 %v51, %v132
    %134 = vmatmul.f32.gmra.mxu0 %v73
    %v135 = vpop.f32.mrf.mxu0
    %v136 = vadd.f32 %v56, %v135
    %137 = vdwg.mxu0
    %v138 = vtanh.pop %v98
    %v139 = vtanh.pop %v127
    %v140 = vtanh.pop %v101
    %v141 = vtanh.pop %v130
    %v142 = vtanh.pop %v104
    %v143 = vtanh.pop %v133
    %v144 = vtanh.pop %v107
    %v145 = vtanh.pop %v136
    %v146 = vld [vmem:[%s3] sm:$0xff]
    %v147 = vld [vmem:[%s3 + $0x8] sm:$0xff]
    %v148 = vld [vmem:[%s3 + $0x10] sm:$0xff]
    %v149 = vld [vmem:[%s3 + $0x18] sm:$0xff]
    %v150 = vld [vmem:[%s4] sm:$0xff]
    %v151 = vld [vmem:[%s4 + $0x8] sm:$0xff]
    %v152 = vld [vmem:[%s4 + $0x10] sm:$0xff]
    %v153 = vld [vmem:[%s4 + $0x18] sm:$0xff]
    %155 = vset.pattern.permute.xlu0 0
    %156 = vperm.xlu0 %155, %v150
    %v157 = vpop.permute.xlu0 %156
    %160 = vset.pattern.permute.xlu0 0
    %161 = vperm.xlu0 %160, %v151
    %v162 = vpop.permute.xlu0 %161
    %165 = vset.pattern.permute.xlu0 0
    %166 = vperm.xlu0 %165, %v152
    %v167 = vpop.permute.xlu0 %166
    %170 = vset.pattern.permute.xlu0 0
    %171 = vperm.xlu0 %170, %v153
    %v172 = vpop.permute.xlu0 %171
    %vm174 = vcmask 261120
    %v176 = vsel %vm174, %v146, 0
    %v179 = vsel %vm174, %v147, 0
    %v182 = vsel %vm174, %v148, 0
    %v185 = vsel %vm174, %v149, 0
    %187 = vmatpush.msra.mxu0 0.0
    %188 = vmatpush.msra.mxu0 0.0
    %189 = vmatpush.msra.mxu0 0.0
    %190 = vmatpush.msra.mxu0 0.0
    %191 = vmatpush.msra.mxu0 0.0
    %192 = vmatpush.msra.mxu0 0.0
    %193 = vmatpush.msra.mxu0 0.0
    %194 = vmatpush.msra.mxu0 0.0
    %195 = vmatpush.msra.mxu0 0.0
    %196 = vmatpush.msra.mxu0 0.0
    %197 = vmatpush.msra.mxu0 0.0
    %198 = vmatpush.msra.mxu0 0.0
    %199 = vmatpush.msra.mxu0 %v144
    %200 = vmatpush.msra.mxu0 %v142
    %201 = vmatpush.msra.mxu0 %v140
    %202 = vmatpush.msra.mxu0 %v138
    %203 = vmatmul.f32.gmra.mxu0 %v176
    %v204 = vpop.f32.mrf.mxu0
    %v205 = vadd.f32 %v157, %v204
    %206 = vmatmul.f32.gmra.mxu0 %v179
    %v207 = vpop.f32.mrf.mxu0
    %v208 = vadd.f32 %v162, %v207
    %209 = vmatmul.f32.gmra.mxu0 %v182
    %v210 = vpop.f32.mrf.mxu0
    %v211 = vadd.f32 %v167, %v210
    %212 = vmatmul.f32.gmra.mxu0 %v185
    %v213 = vpop.f32.mrf.mxu0
    %v214 = vadd.f32 %v172, %v213
    %215 = vdwg.mxu0
    %216 = vmatpush.msra.mxu0 0.0
    %217 = vmatpush.msra.mxu0 0.0
    %218 = vmatpush.msra.mxu0 0.0
    %219 = vmatpush.msra.mxu0 0.0
    %220 = vmatpush.msra.mxu0 0.0
    %221 = vmatpush.msra.mxu0 0.0
    %222 = vmatpush.msra.mxu0 0.0
    %223 = vmatpush.msra.mxu0 0.0
    %224 = vmatpush.msra.mxu0 0.0
    %225 = vmatpush.msra.mxu0 0.0
    %226 = vmatpush.msra.mxu0 0.0
    %227 = vmatpush.msra.mxu0 0.0
    %228 = vmatpush.msra.mxu0 %v145
    %229 = vmatpush.msra.mxu0 %v143
    %230 = vmatpush.msra.mxu0 %v141
    %231 = vmatpush.msra.mxu0 %v139
    %232 = vmatmul.f32.gmra.mxu0 %v176
    %v233 = vpop.f32.mrf.mxu0
    %v234 = vadd.f32 %v157, %v233
    %235 = vmatmul.f32.gmra.mxu0 %v179
    %v236 = vpop.f32.mrf.mxu0
    %v237 = vadd.f32 %v162, %v236
    %238 = vmatmul.f32.gmra.mxu0 %v182
    %v239 = vpop.f32.mrf.mxu0
    %v240 = vadd.f32 %v167, %v239
    %241 = vmatmul.f32.gmra.mxu0 %v185
    %v242 = vpop.f32.mrf.mxu0
    %v243 = vadd.f32 %v172, %v242
    %244 = vdwg.mxu0
    %v245 = vtanh.pop %v205
    %v246 = vtanh.pop %v234
    %v247 = vtanh.pop %v208
    %v248 = vtanh.pop %v237
    %v249 = vtanh.pop %v211
    %v250 = vtanh.pop %v240
    %v251 = vtanh.pop %v214
    %v252 = vtanh.pop %v243
    %s253 = scalar_lea.vmem %s3, 32
    %v254 = vld [vmem:[%s253] sm:$0xff]
    %v255 = vld [vmem:[%s253 + $0x8] sm:$0xff]
    %v256 = vld [vmem:[%s253 + $0x10] sm:$0xff]
    %v257 = vld [vmem:[%s253 + $0x18] sm:$0xff]
    %s258 = scalar_lea.vmem %s4, 32
    %v259 = vld [vmem:[%s258] sm:$0xff]
    %v260 = vld [vmem:[%s258 + $0x8] sm:$0xff]
    %v261 = vld [vmem:[%s258 + $0x10] sm:$0xff]
    %v262 = vld [vmem:[%s258 + $0x18] sm:$0xff]
    %264 = vset.pattern.permute.xlu0 0
    %265 = vperm.xlu0 %264, %v259
    %v266 = vpop.permute.xlu0 %265
    %269 = vset.pattern.permute.xlu0 0
    %270 = vperm.xlu0 %269, %v260
    %v271 = vpop.permute.xlu0 %270
    %274 = vset.pattern.permute.xlu0 0
    %275 = vperm.xlu0 %274, %v261
    %v276 = vpop.permute.xlu0 %275
    %279 = vset.pattern.permute.xlu0 0
    %280 = vperm.xlu0 %279, %v262
    %v281 = vpop.permute.xlu0 %280
    %v284 = vsel %vm174, %v254, 0
    %v287 = vsel %vm174, %v255, 0
    %v290 = vsel %vm174, %v256, 0
    %v293 = vsel %vm174, %v257, 0
    %295 = vmatpush.msra.mxu0 0.0
    %296 = vmatpush.msra.mxu0 0.0
    %297 = vmatpush.msra.mxu0 0.0
    %298 = vmatpush.msra.mxu0 0.0
    %299 = vmatpush.msra.mxu0 0.0
    %300 = vmatpush.msra.mxu0 0.0
    %301 = vmatpush.msra.mxu0 0.0
    %302 = vmatpush.msra.mxu0 0.0
    %303 = vmatpush.msra.mxu0 0.0
    %304 = vmatpush.msra.mxu0 0.0
    %305 = vmatpush.msra.mxu0 0.0
    %306 = vmatpush.msra.mxu0 0.0
    %307 = vmatpush.msra.mxu0 %v251
    %308 = vmatpush.msra.mxu0 %v249
    %309 = vmatpush.msra.mxu0 %v247
    %310 = vmatpush.msra.mxu0 %v245
    %311 = vmatmul.f32.gmra.mxu0 %v284
    %v312 = vpop.f32.mrf.mxu0
    %v313 = vadd.f32 %v266, %v312
    %314 = vmatmul.f32.gmra.mxu0 %v287
    %v315 = vpop.f32.mrf.mxu0
    %v316 = vadd.f32 %v271, %v315
    %317 = vmatmul.f32.gmra.mxu0 %v290
    %v318 = vpop.f32.mrf.mxu0
    %v319 = vadd.f32 %v276, %v318
    %320 = vmatmul.f32.gmra.mxu0 %v293
    %v321 = vpop.f32.mrf.mxu0
    %v322 = vadd.f32 %v281, %v321
    %323 = vdwg.mxu0
    %324 = vmatpush.msra.mxu0 0.0
    %325 = vmatpush.msra.mxu0 0.0
    %326 = vmatpush.msra.mxu0 0.0
    %327 = vmatpush.msra.mxu0 0.0
    %328 = vmatpush.msra.mxu0 0.0
    %329 = vmatpush.msra.mxu0 0.0
    %330 = vmatpush.msra.mxu0 0.0
    %331 = vmatpush.msra.mxu0 0.0
    %332 = vmatpush.msra.mxu0 0.0
    %333 = vmatpush.msra.mxu0 0.0
    %334 = vmatpush.msra.mxu0 0.0
    %335 = vmatpush.msra.mxu0 0.0
    %336 = vmatpush.msra.mxu0 %v252
    %337 = vmatpush.msra.mxu0 %v250
    %338 = vmatpush.msra.mxu0 %v248
    %339 = vmatpush.msra.mxu0 %v246
    %340 = vmatmul.f32.gmra.mxu0 %v284
    %v341 = vpop.f32.mrf.mxu0
    %v342 = vadd.f32 %v266, %v341
    %343 = vmatmul.f32.gmra.mxu0 %v287
    %v344 = vpop.f32.mrf.mxu0
    %v345 = vadd.f32 %v271, %v344
    %346 = vmatmul.f32.gmra.mxu0 %v290
    %v347 = vpop.f32.mrf.mxu0
    %v348 = vadd.f32 %v276, %v347
    %349 = vmatmul.f32.gmra.mxu0 %v293
    %v350 = vpop.f32.mrf.mxu0
    %v351 = vadd.f32 %v281, %v350
    %352 = vdwg.mxu0
    %v353 = vtanh.pop %v313
    %v354 = vtanh.pop %v342
    %v355 = vtanh.pop %v316
    %v356 = vtanh.pop %v345
    %v357 = vtanh.pop %v319
    %v358 = vtanh.pop %v348
    %v359 = vtanh.pop %v322
    %v360 = vtanh.pop %v351
    %v361 = vld [vmem:[%s5] sm:$0x1]
    %v362 = vld [vmem:[#allocation2] sm:$0x1]
    %364 = vset.pattern.permute.xlu0 0
    %365 = vperm.xlu0 %364, %v362
    %v366 = vpop.permute.xlu0 %365
    %v368 = vperm.slane %v366, 0
    %v370 = vsel %vm174, %v361, 0
    %372 = vmatpush.msra.mxu0 0.0
    %373 = vmatpush.msra.mxu0 0.0
    %374 = vmatpush.msra.mxu0 0.0
    %375 = vmatpush.msra.mxu0 0.0
    %376 = vmatpush.msra.mxu0 0.0
    %377 = vmatpush.msra.mxu0 0.0
    %378 = vmatpush.msra.mxu0 0.0
    %379 = vmatpush.msra.mxu0 0.0
    %380 = vmatpush.msra.mxu0 0.0
    %381 = vmatpush.msra.mxu0 0.0
    %382 = vmatpush.msra.mxu0 0.0
    %383 = vmatpush.msra.mxu0 0.0
    %384 = vmatpush.msra.mxu0 %v359
    %385 = vmatpush.msra.mxu0 %v357
    %386 = vmatpush.msra.mxu0 %v355
    %387 = vmatpush.msra.mxu0 %v353
    %388 = vmatmul.f32.gmra.mxu0 %v370
    %v389 = vpop.f32.mrf.mxu0
    %v390 = vadd.f32 %v368, %v389
    %391 = vdwg.mxu0
    %392 = vmatpush.msra.mxu0 0.0
    %393 = vmatpush.msra.mxu0 0.0
    %394 = vmatpush.msra.mxu0 0.0
    %395 = vmatpush.msra.mxu0 0.0
    %396 = vmatpush.msra.mxu0 0.0
    %397 = vmatpush.msra.mxu0 0.0
    %398 = vmatpush.msra.mxu0 0.0
    %399 = vmatpush.msra.mxu0 0.0
    %400 = vmatpush.msra.mxu0 0.0
    %401 = vmatpush.msra.mxu0 0.0
    %402 = vmatpush.msra.mxu0 0.0
    %403 = vmatpush.msra.mxu0 0.0
    %404 = vmatpush.msra.mxu0 %v360
    %405 = vmatpush.msra.mxu0 %v358
    %406 = vmatpush.msra.mxu0 %v356
    %407 = vmatpush.msra.mxu0 %v354
    %408 = vmatmul.f32.gmra.mxu0 %v370
    %v409 = vpop.f32.mrf.mxu0
    %v410 = vadd.f32 %v368, %v409
    %411 = vdwg.mxu0
    %v414 = vrot.slane %v410, 7
    %vm415 = vcmask 1040384
    %v416 = vsel %vm415, %v390, %v414
    %v418 = vlaneseq
    %vm419 = vcmp.ge.s32.totalorder %v418, 0
    %vm420 = vcmp.lt.s32.totalorder %v418, 256
    %vm421 = vmand %vm419, %vm420
    %422 = vst.msk [vmem:[#allocation3] sm:$0x3] %vm421, %v416
    // Predicated region
    $region30: #{tpu_custom_call.1} parent=1 // pred_check
      _
    $region31: #{tpu_custom_call.1} parent=1 // pred_check_branch
      %424 = sbr.rel (0) target = $region33
    $region32: #{tpu_custom_call.1} parent=1 // pred_region
      %426 = vsyncadd [#allocation4], 0
      %s428 = sshll.u32 [#allocation3], 4
      %s429 = int_to_ptr.vmem [resolvable:$true] %s428
      %s430 = sshll.u32 %s7, 4
      %s431 = int_to_ptr.hbm [resolvable:$true] %s430
      %433 = dma.vmem_to_hbm [thread:$0]  %s429, 32, %s431, [#allocation4]
    $region33: #{tpu_custom_call.1} parent=1 // pred_fallthru
      _
    // Predicated region
    $region34: #{tpu_custom_call.1} parent=1 // pred_check
      _
    $region35: #{tpu_custom_call.1} parent=1 // pred_check_branch
      %435 = sbr.rel (0) target = $region37
    $region36: #{tpu_custom_call.1} parent=1 // pred_region
      %437 = dma.done [#allocation4], 32
    $region37: #{tpu_custom_call.1} parent=1 // pred_fallthru
      _
    %438 = vsyncpa [#allocation4], 1

// kernel: tpu_custom_call.1
$region0: #{tpu_custom_call.1}
  #allocation0 [shape = 'u32[]', space=smem, size = 0x4, offset = 0x4, fixed_abs, tag = 'smem constant byte address 0x4 - core index']
  #allocation1 [shape = 'u32[72,128]{1,0:T(1,128)}', space=vmem, size = 0x9000, scoped, tag = 'internal scratch']
  #allocation2 [shape = 'f32[1,1]{1,0:T(1,128)S(1)}', space=vmem, size = 0x200, scoped, tag = 'scoped memory for tpu_custom_call.1']
  %s0 = inlined_call_operand.vmem [shape: f32[2,256], index: 0, kind: input, shape index: {}]
  %s1 = inlined_call_operand.vmem [shape: f32[32,2], index: 1, kind: input, shape index: {}]
  %s2 = inlined_call_operand.vmem [shape: f32[32,1], index: 2, kind: input, shape index: {}]
  %s3 = inlined_call_operand.vmem [shape: f32[2,32,32], index: 3, kind: input, shape index: {}]
  %s4 = inlined_call_operand.vmem [shape: f32[2,32,1], index: 4, kind: input, shape index: {}]
  %s5 = inlined_call_operand.vmem [shape: f32[1,32], index: 5, kind: input, shape index: {}]
  %s6 = inlined_call_operand.<no memory space> [shape: f32[1,1], index: 6, kind: input, shape index: {}]
  %s7 = inlined_call_operand.hbm [shape: f32[1,256], index: 7, kind: output, shape index: {}]
  %s8 = sld [smem:[#allocation0]]
  $region38: #{tpu_custom_call.1} parent=0
    _
  %s10 = ssub.s32 1, %s8
  %s11 = scalar_select 0, %s10, %s8
  %v12 = vstv %s6
  %13 = vst [vmem:[#allocation2] sm:$0x1] %v12
  $region1: #{tpu_custom_call.1} parent=0
    #allocation3 [shape = 'u8[1024]{0}', space=vmem, size = 0x400, scoped, tag = 'output window, operand 0, single buffered']
    #allocation4 [shape = 's32[1]{0}', space=sflag, size = 0x4, scoped, tag = 'scoped memory for tpu_custom_call.1']
    %14 = vsyncpa [#allocation4], 0
    // Predicated region
    $region2: #{tpu_custom_call.1} parent=1 // pred_check
      _
    $region3: #{tpu_custom_call.1} parent=1 // pred_check_branch
      %16 = sbr.rel (0) target = $region5
    $region4: #{tpu_custom_call.1} parent=1 // pred_region
      _
    $region5: #{tpu_custom_call.1} parent=1 // pred_fallthru
      _
    // Predicated region
    $region6: #{tpu_custom_call.1} parent=1 // pred_check
      _
    $region7: #{tpu_custom_call.1} parent=1 // pred_check_branch
      %18 = sbr.rel (0) target = $region9
    $region8: #{tpu_custom_call.1} parent=1 // pred_region
      _
    $region9: #{tpu_custom_call.1} parent=1 // pred_fallthru
      _
    // Predicated region
    $region10: #{tpu_custom_call.1} parent=1 // pred_check
      _
    $region11: #{tpu_custom_call.1} parent=1 // pred_check_branch
      %20 = sbr.rel (0) target = $region13
    $region12: #{tpu_custom_call.1} parent=1 // pred_region
      _
    $region13: #{tpu_custom_call.1} parent=1 // pred_fallthru
      _
    // Predicated region
    $region14: #{tpu_custom_call.1} parent=1 // pred_check
      _
    $region15: #{tpu_custom_call.1} parent=1 // pred_check_branch
      %22 = sbr.rel (0) target = $region17
    $region16: #{tpu_custom_call.1} parent=1 // pred_region
      _
    $region17: #{tpu_custom_call.1} parent=1 // pred_fallthru
      _
    // Predicated region
    $region18: #{tpu_custom_call.1} parent=1 // pred_check
      _
    $region19: #{tpu_custom_call.1} parent=1 // pred_check_branch
      %24 = sbr.rel (0) target = $region21
    $region20: #{tpu_custom_call.1} parent=1 // pred_region
      _
    $region21: #{tpu_custom_call.1} parent=1 // pred_fallthru
      _
    // Predicated region
    $region22: #{tpu_custom_call.1} parent=1 // pred_check
      _
    $region23: #{tpu_custom_call.1} parent=1 // pred_check_branch
      %26 = sbr.rel (0) target = $region25
    $region24: #{tpu_custom_call.1} parent=1 // pred_region
      _
    $region25: #{tpu_custom_call.1} parent=1 // pred_fallthru
      _
    // Predicated region
    $region26: #{tpu_custom_call.1} parent=1 // pred_check
      _
    $region27: #{tpu_custom_call.1} parent=1 // pred_check_branch
      %28 = sbr.rel (0) target = $region29
    $region28: #{tpu_custom_call.1} parent=1 // pred_region
      _
    $region29: #{tpu_custom_call.1} parent=1 // pred_fallthru
      _
    %v29 = vld [vmem:[%s0] sm:$0xf]
    %v30 = vld [vmem:[%s1] sm:$0xff]
    %v31 = vld [vmem:[%s1 + $0x8] sm:$0xff]
    %v32 = vld [vmem:[%s1 + $0x10] sm:$0xff]
    %v33 = vld [vmem:[%s1 + $0x18] sm:$0xff]
    %v34 = vld [vmem:[%s2] sm:$0xff]
    %v35 = vld [vmem:[%s2 + $0x8] sm:$0xff]
    %v36 = vld [vmem:[%s2 + $0x10] sm:$0xff]
    %v37 = vld [vmem:[%s2 + $0x18] sm:$0xff]
    %39 = vset.pattern.permute.xlu0 0
    %40 = vperm.xlu0 %39, %v34
    %v41 = vpop.permute.xlu0 %40
    %44 = vset.pattern.permute.xlu0 0
    %45 = vperm.xlu0 %44, %v35
    %v46 = vpop.permute.xlu0 %45
    %49 = vset.pattern.permute.xlu0 0
    %50 = vperm.xlu0 %49, %v36
    %v51 = vpop.permute.xlu0 %50
    %54 = vset.pattern.permute.xlu0 0
    %55 = vperm.xlu0 %54, %v37
    %v56 = vpop.permute.xlu0 %55
    %59 = vst [vmem:[#allocation1] ss:$4 sm:$0xff] %v29
    %v60 = vld.sshfl [vmem:[#allocation1] sm:$0xff pattern:$0x73625140]
    %v61 = vld.sshfl [vmem:[#allocation1 + $0x8] sm:$0xff pattern:$0x73625140]
    %vm62 = vcmask 15360
    %v64 = vsel %vm62, %v30, 0
    %v67 = vsel %vm62, %v31, 0
    %v70 = vsel %vm62, %v32, 0
    %v73 = vsel %vm62, %v33, 0
    %vm75 = vcmask 1041408
    %v76 = vsel %vm75, %v60, 0
    %v78 = vsel %vm75, %v61, 0
    %80 = vmatpush.msra.mxu0 0.0
    %81 = vmatpush.msra.mxu0 0.0
    %82 = vmatpush.msra.mxu0 0.0
    %83 = vmatpush.msra.mxu0 0.0
    %84 = vmatpush.msra.mxu0 0.0
    %85 = vmatpush.msra.mxu0 0.0
    %86 = vmatpush.msra.mxu0 0.0
    %87 = vmatpush.msra.mxu0 0.0
    %88 = vmatpush.msra.mxu0 0.0
    %89 = vmatpush.msra.mxu0 0.0
    %90 = vmatpush.msra.mxu0 0.0
    %91 = vmatpush.msra.mxu0 0.0
    %92 = vmatpush.msra.mxu0 0.0
    %93 = vmatpush.msra.mxu0 0.0
    %94 = vmatpush.msra.mxu0 0.0
    %95 = vmatpush.msra.mxu0 %v76
    %96 = vmatmul.f32.gmra.mxu0 %v64
    %v97 = vpop.f32.mrf.mxu0
    %v98 = vadd.f32 %v41, %v97
    %99 = vmatmul.f32.gmra.mxu0 %v67
    %v100 = vpop.f32.mrf.mxu0
    %v101 = vadd.f32 %v46, %v100
    %102 = vmatmul.f32.gmra.mxu0 %v70
    %v103 = vpop.f32.mrf.mxu0
    %v104 = vadd.f32 %v51, %v103
    %105 = vmatmul.f32.gmra.mxu0 %v73
    %v106 = vpop.f32.mrf.mxu0
    %v107 = vadd.f32 %v56, %v106
    %108 = vdwg.mxu0
    %109 = vmatpush.msra.mxu0 0.0
    %110 = vmatpush.msra.mxu0 0.0
    %111 = vmatpush.msra.mxu0 0.0
    %112 = vmatpush.msra.mxu0 0.0
    %113 = vmatpush.msra.mxu0 0.0
    %114 = vmatpush.msra.mxu0 0.0
    %115 = vmatpush.msra.mxu0 0.0
    %116 = vmatpush.msra.mxu0 0.0
    %117 = vmatpush.msra.mxu0 0.0
    %118 = vmatpush.msra.mxu0 0.0
    %119 = vmatpush.msra.mxu0 0.0
    %120 = vmatpush.msra.mxu0 0.0
    %121 = vmatpush.msra.mxu0 0.0
    %122 = vmatpush.msra.mxu0 0.0
    %123 = vmatpush.msra.mxu0 0.0
    %124 = vmatpush.msra.mxu0 %v78
    %125 = vmatmul.f32.gmra.mxu0 %v64
    %v126 = vpop.f32.mrf.mxu0
    %v127 = vadd.f32 %v41, %v126
    %128 = vmatmul.f32.gmra.mxu0 %v67
    %v129 = vpop.f32.mrf.mxu0
    %v130 = vadd.f32 %v46, %v129
    %131 = vmatmul.f32.gmra.mxu0 %v70
    %v132 = vpop.f32.mrf.mxu0
    %v133 = vadd.f32 %v51, %v132
    %134 = vmatmul.f32.gmra.mxu0 %v73
    %v135 = vpop.f32.mrf.mxu0
    %v136 = vadd.f32 %v56, %v135
    %137 = vdwg.mxu0
    %v138 = vtanh.pop %v98
    %v139 = vtanh.pop %v127
    %v140 = vtanh.pop %v101
    %v141 = vtanh.pop %v130
    %v142 = vtanh.pop %v104
    %v143 = vtanh.pop %v133
    %v144 = vtanh.pop %v107
    %v145 = vtanh.pop %v136
    %v146 = vld [vmem:[%s3] sm:$0xff]
    %v147 = vld [vmem:[%s3 + $0x8] sm:$0xff]
    %v148 = vld [vmem:[%s3 + $0x10] sm:$0xff]
    %v149 = vld [vmem:[%s3 + $0x18] sm:$0xff]
    %v150 = vld [vmem:[%s4] sm:$0xff]
    %v151 = vld [vmem:[%s4 + $0x8] sm:$0xff]
    %v152 = vld [vmem:[%s4 + $0x10] sm:$0xff]
    %v153 = vld [vmem:[%s4 + $0x18] sm:$0xff]
    %155 = vset.pattern.permute.xlu0 0
    %156 = vperm.xlu0 %155, %v150
    %v157 = vpop.permute.xlu0 %156
    %160 = vset.pattern.permute.xlu0 0
    %161 = vperm.xlu0 %160, %v151
    %v162 = vpop.permute.xlu0 %161
    %165 = vset.pattern.permute.xlu0 0
    %166 = vperm.xlu0 %165, %v152
    %v167 = vpop.permute.xlu0 %166
    %170 = vset.pattern.permute.xlu0 0
    %171 = vperm.xlu0 %170, %v153
    %v172 = vpop.permute.xlu0 %171
    %vm174 = vcmask 261120
    %v176 = vsel %vm174, %v146, 0
    %v179 = vsel %vm174, %v147, 0
    %v182 = vsel %vm174, %v148, 0
    %v185 = vsel %vm174, %v149, 0
    %187 = vmatpush.msra.mxu0 0.0
    %188 = vmatpush.msra.mxu0 0.0
    %189 = vmatpush.msra.mxu0 0.0
    %190 = vmatpush.msra.mxu0 0.0
    %191 = vmatpush.msra.mxu0 0.0
    %192 = vmatpush.msra.mxu0 0.0
    %193 = vmatpush.msra.mxu0 0.0
    %194 = vmatpush.msra.mxu0 0.0
    %195 = vmatpush.msra.mxu0 0.0
    %196 = vmatpush.msra.mxu0 0.0
    %197 = vmatpush.msra.mxu0 0.0
    %198 = vmatpush.msra.mxu0 0.0
    %199 = vmatpush.msra.mxu0 %v144
    %200 = vmatpush.msra.mxu0 %v142
    %201 = vmatpush.msra.mxu0 %v140
    %202 = vmatpush.msra.mxu0 %v138
    %203 = vmatmul.f32.gmra.mxu0 %v176
    %v204 = vpop.f32.mrf.mxu0
    %v205 = vadd.f32 %v157, %v204
    %206 = vmatmul.f32.gmra.mxu0 %v179
    %v207 = vpop.f32.mrf.mxu0
    %v208 = vadd.f32 %v162, %v207
    %209 = vmatmul.f32.gmra.mxu0 %v182
    %v210 = vpop.f32.mrf.mxu0
    %v211 = vadd.f32 %v167, %v210
    %212 = vmatmul.f32.gmra.mxu0 %v185
    %v213 = vpop.f32.mrf.mxu0
    %v214 = vadd.f32 %v172, %v213
    %215 = vdwg.mxu0
    %216 = vmatpush.msra.mxu0 0.0
    %217 = vmatpush.msra.mxu0 0.0
    %218 = vmatpush.msra.mxu0 0.0
    %219 = vmatpush.msra.mxu0 0.0
    %220 = vmatpush.msra.mxu0 0.0
    %221 = vmatpush.msra.mxu0 0.0
    %222 = vmatpush.msra.mxu0 0.0
    %223 = vmatpush.msra.mxu0 0.0
    %224 = vmatpush.msra.mxu0 0.0
    %225 = vmatpush.msra.mxu0 0.0
    %226 = vmatpush.msra.mxu0 0.0
    %227 = vmatpush.msra.mxu0 0.0
    %228 = vmatpush.msra.mxu0 %v145
    %229 = vmatpush.msra.mxu0 %v143
    %230 = vmatpush.msra.mxu0 %v141
    %231 = vmatpush.msra.mxu0 %v139
    %232 = vmatmul.f32.gmra.mxu0 %v176
    %v233 = vpop.f32.mrf.mxu0
    %v234 = vadd.f32 %v157, %v233
    %235 = vmatmul.f32.gmra.mxu0 %v179
    %v236 = vpop.f32.mrf.mxu0
    %v237 = vadd.f32 %v162, %v236
    %238 = vmatmul.f32.gmra.mxu0 %v182
    %v239 = vpop.f32.mrf.mxu0
    %v240 = vadd.f32 %v167, %v239
    %241 = vmatmul.f32.gmra.mxu0 %v185
    %v242 = vpop.f32.mrf.mxu0
    %v243 = vadd.f32 %v172, %v242
    %244 = vdwg.mxu0
    %v245 = vtanh.pop %v205
    %v246 = vtanh.pop %v234
    %v247 = vtanh.pop %v208
    %v248 = vtanh.pop %v237
    %v249 = vtanh.pop %v211
    %v250 = vtanh.pop %v240
    %v251 = vtanh.pop %v214
    %v252 = vtanh.pop %v243
    %s253 = scalar_lea.vmem %s3, 32
    %v254 = vld [vmem:[%s253] sm:$0xff]
    %v255 = vld [vmem:[%s253 + $0x8] sm:$0xff]
    %v256 = vld [vmem:[%s253 + $0x10] sm:$0xff]
    %v257 = vld [vmem:[%s253 + $0x18] sm:$0xff]
    %s258 = scalar_lea.vmem %s4, 32
    %v259 = vld [vmem:[%s258] sm:$0xff]
    %v260 = vld [vmem:[%s258 + $0x8] sm:$0xff]
    %v261 = vld [vmem:[%s258 + $0x10] sm:$0xff]
    %v262 = vld [vmem:[%s258 + $0x18] sm:$0xff]
    %264 = vset.pattern.permute.xlu0 0
    %265 = vperm.xlu0 %264, %v259
    %v266 = vpop.permute.xlu0 %265
    %269 = vset.pattern.permute.xlu0 0
    %270 = vperm.xlu0 %269, %v260
    %v271 = vpop.permute.xlu0 %270
    %274 = vset.pattern.permute.xlu0 0
    %275 = vperm.xlu0 %274, %v261
    %v276 = vpop.permute.xlu0 %275
    %279 = vset.pattern.permute.xlu0 0
    %280 = vperm.xlu0 %279, %v262
    %v281 = vpop.permute.xlu0 %280
    %v284 = vsel %vm174, %v254, 0
    %v287 = vsel %vm174, %v255, 0
    %v290 = vsel %vm174, %v256, 0
    %v293 = vsel %vm174, %v257, 0
    %295 = vmatpush.msra.mxu0 0.0
    %296 = vmatpush.msra.mxu0 0.0
    %297 = vmatpush.msra.mxu0 0.0
    %298 = vmatpush.msra.mxu0 0.0
    %299 = vmatpush.msra.mxu0 0.0
    %300 = vmatpush.msra.mxu0 0.0
    %301 = vmatpush.msra.mxu0 0.0
    %302 = vmatpush.msra.mxu0 0.0
    %303 = vmatpush.msra.mxu0 0.0
    %304 = vmatpush.msra.mxu0 0.0
    %305 = vmatpush.msra.mxu0 0.0
    %306 = vmatpush.msra.mxu0 0.0
    %307 = vmatpush.msra.mxu0 %v251
    %308 = vmatpush.msra.mxu0 %v249
    %309 = vmatpush.msra.mxu0 %v247
    %310 = vmatpush.msra.mxu0 %v245
    %311 = vmatmul.f32.gmra.mxu0 %v284
    %v312 = vpop.f32.mrf.mxu0
    %v313 = vadd.f32 %v266, %v312
    %314 = vmatmul.f32.gmra.mxu0 %v287
    %v315 = vpop.f32.mrf.mxu0
    %v316 = vadd.f32 %v271, %v315
    %317 = vmatmul.f32.gmra.mxu0 %v290
    %v318 = vpop.f32.mrf.mxu0
    %v319 = vadd.f32 %v276, %v318
    %320 = vmatmul.f32.gmra.mxu0 %v293
    %v321 = vpop.f32.mrf.mxu0
    %v322 = vadd.f32 %v281, %v321
    %323 = vdwg.mxu0
    %324 = vmatpush.msra.mxu0 0.0
    %325 = vmatpush.msra.mxu0 0.0
    %326 = vmatpush.msra.mxu0 0.0
    %327 = vmatpush.msra.mxu0 0.0
    %328 = vmatpush.msra.mxu0 0.0
    %329 = vmatpush.msra.mxu0 0.0
    %330 = vmatpush.msra.mxu0 0.0
    %331 = vmatpush.msra.mxu0 0.0
    %332 = vmatpush.msra.mxu0 0.0
    %333 = vmatpush.msra.mxu0 0.0
    %334 = vmatpush.msra.mxu0 0.0
    %335 = vmatpush.msra.mxu0 0.0
    %336 = vmatpush.msra.mxu0 %v252
    %337 = vmatpush.msra.mxu0 %v250
    %338 = vmatpush.msra.mxu0 %v248
    %339 = vmatpush.msra.mxu0 %v246
    %340 = vmatmul.f32.gmra.mxu0 %v284
    %v341 = vpop.f32.mrf.mxu0
    %v342 = vadd.f32 %v266, %v341
    %343 = vmatmul.f32.gmra.mxu0 %v287
    %v344 = vpop.f32.mrf.mxu0
    %v345 = vadd.f32 %v271, %v344
    %346 = vmatmul.f32.gmra.mxu0 %v290
    %v347 = vpop.f32.mrf.mxu0
    %v348 = vadd.f32 %v276, %v347
    %349 = vmatmul.f32.gmra.mxu0 %v293
    %v350 = vpop.f32.mrf.mxu0
    %v351 = vadd.f32 %v281, %v350
    %352 = vdwg.mxu0
    %v353 = vtanh.pop %v313
    %v354 = vtanh.pop %v342
    %v355 = vtanh.pop %v316
    %v356 = vtanh.pop %v345
    %v357 = vtanh.pop %v319
    %v358 = vtanh.pop %v348
    %v359 = vtanh.pop %v322
    %v360 = vtanh.pop %v351
    %v361 = vld [vmem:[%s5] sm:$0x1]
    %v362 = vld [vmem:[#allocation2] sm:$0x1]
    %364 = vset.pattern.permute.xlu0 0
    %365 = vperm.xlu0 %364, %v362
    %v366 = vpop.permute.xlu0 %365
    %v368 = vperm.slane %v366, 0
    %v370 = vsel %vm174, %v361, 0
    %372 = vmatpush.msra.mxu0 0.0
    %373 = vmatpush.msra.mxu0 0.0
    %374 = vmatpush.msra.mxu0 0.0
    %375 = vmatpush.msra.mxu0 0.0
    %376 = vmatpush.msra.mxu0 0.0
    %377 = vmatpush.msra.mxu0 0.0
    %378 = vmatpush.msra.mxu0 0.0
    %379 = vmatpush.msra.mxu0 0.0
    %380 = vmatpush.msra.mxu0 0.0
    %381 = vmatpush.msra.mxu0 0.0
    %382 = vmatpush.msra.mxu0 0.0
    %383 = vmatpush.msra.mxu0 0.0
    %384 = vmatpush.msra.mxu0 %v359
    %385 = vmatpush.msra.mxu0 %v357
    %386 = vmatpush.msra.mxu0 %v355
    %387 = vmatpush.msra.mxu0 %v353
    %388 = vmatmul.f32.gmra.mxu0 %v370
    %v389 = vpop.f32.mrf.mxu0
    %v390 = vadd.f32 %v368, %v389
    %391 = vdwg.mxu0
    %392 = vmatpush.msra.mxu0 0.0
    %393 = vmatpush.msra.mxu0 0.0
    %394 = vmatpush.msra.mxu0 0.0
    %395 = vmatpush.msra.mxu0 0.0
    %396 = vmatpush.msra.mxu0 0.0
    %397 = vmatpush.msra.mxu0 0.0
    %398 = vmatpush.msra.mxu0 0.0
    %399 = vmatpush.msra.mxu0 0.0
    %400 = vmatpush.msra.mxu0 0.0
    %401 = vmatpush.msra.mxu0 0.0
    %402 = vmatpush.msra.mxu0 0.0
    %403 = vmatpush.msra.mxu0 0.0
    %404 = vmatpush.msra.mxu0 %v360
    %405 = vmatpush.msra.mxu0 %v358
    %406 = vmatpush.msra.mxu0 %v356
    %407 = vmatpush.msra.mxu0 %v354
    %408 = vmatmul.f32.gmra.mxu0 %v370
    %v409 = vpop.f32.mrf.mxu0
    %v410 = vadd.f32 %v368, %v409
    %411 = vdwg.mxu0
    %v414 = vrot.slane %v410, 7
    %vm415 = vcmask 1040384
    %v416 = vsel %vm415, %v390, %v414
    %v418 = vlaneseq
    %vm419 = vcmp.ge.s32.totalorder %v418, 0
    %vm420 = vcmp.lt.s32.totalorder %v418, 256
    %vm421 = vmand %vm419, %vm420
    %422 = vst.msk [vmem:[#allocation3] sm:$0x3] %vm421, %v416
    // Predicated region
    $region30: #{tpu_custom_call.1} parent=1 // pred_check
      _
    $region31: #{tpu_custom_call.1} parent=1 // pred_check_branch
      %424 = sbr.rel (0) target = $region33
    $region32: #{tpu_custom_call.1} parent=1 // pred_region
      %426 = vsyncadd [#allocation4], 0
      %s428 = sshll.u32 [#allocation3], 4
      %s429 = int_to_ptr.vmem [resolvable:$true] %s428
      %s430 = sshll.u32 %s7, 4
      %s431 = int_to_ptr.hbm [resolvable:$true] %s430
      %433 = dma.vmem_to_hbm [thread:$0]  %s429, 32, %s431, [#allocation4]
    $region33: #{tpu_custom_call.1} parent=1 // pred_fallthru
      _
    // Predicated region
    $region34: #{tpu_custom_call.1} parent=1 // pred_check
      _
    $region35: #{tpu_custom_call.1} parent=1 // pred_check_branch
      %435 = sbr.rel (0) target = $region37
    $region36: #{tpu_custom_call.1} parent=1 // pred_region
      %437 = dma.done [#allocation4], 32
    $region37: #{tpu_custom_call.1} parent=1 // pred_fallthru
      _
    %438 = vsyncpa [#allocation4], 1

// kernel: tpu_custom_call.1
$region0: #{tpu_custom_call.1}
  #allocation0 [shape = 'u32[]', space=smem, size = 0x4, offset = 0x4, fixed_abs, tag = 'smem constant byte address 0x4 - core index']
  #allocation1 [shape = 'u32[72,128]{1,0:T(1,128)}', space=vmem, size = 0x9000, scoped, tag = 'internal scratch']
  #allocation2 [shape = 'f32[1,1]{1,0:T(1,128)S(1)}', space=vmem, size = 0x200, scoped, tag = 'scoped memory for tpu_custom_call.1']
  %s0 = inlined_call_operand.vmem [shape: f32[2,256], index: 0, kind: input, shape index: {}]
  %s1 = inlined_call_operand.vmem [shape: f32[32,2], index: 1, kind: input, shape index: {}]
  %s2 = inlined_call_operand.vmem [shape: f32[32,1], index: 2, kind: input, shape index: {}]
  %s3 = inlined_call_operand.vmem [shape: f32[2,32,32], index: 3, kind: input, shape index: {}]
  %s4 = inlined_call_operand.vmem [shape: f32[2,32,1], index: 4, kind: input, shape index: {}]
  %s5 = inlined_call_operand.vmem [shape: f32[1,32], index: 5, kind: input, shape index: {}]
  %s6 = inlined_call_operand.<no memory space> [shape: f32[1,1], index: 6, kind: input, shape index: {}]
  %s7 = inlined_call_operand.hbm [shape: f32[1,256], index: 7, kind: output, shape index: {}]
  %s8 = sld [smem:[#allocation0]]
  $region38: #{tpu_custom_call.1} parent=0
    _
  %s10 = ssub.s32 1, %s8
  %s11 = scalar_select 0, %s10, %s8
  %v12 = vstv %s6
  %13 = vst [vmem:[#allocation2] sm:$0x1] %v12
  $region1: #{tpu_custom_call.1} parent=0
    #allocation3 [shape = 'u8[1024]{0}', space=vmem, size = 0x400, scoped, tag = 'output window, operand 0, single buffered']
    #allocation4 [shape = 's32[1]{0}', space=sflag, size = 0x4, scoped, tag = 'scoped memory for tpu_custom_call.1']
    %14 = vsyncpa [#allocation4], 0
    // Predicated region
    $region2: #{tpu_custom_call.1} parent=1 // pred_check
      _
    $region3: #{tpu_custom_call.1} parent=1 // pred_check_branch
      %16 = sbr.rel (0) target = $region5
    $region4: #{tpu_custom_call.1} parent=1 // pred_region
      _
    $region5: #{tpu_custom_call.1} parent=1 // pred_fallthru
      _
    // Predicated region
    $region6: #{tpu_custom_call.1} parent=1 // pred_check
      _
    $region7: #{tpu_custom_call.1} parent=1 // pred_check_branch
      %18 = sbr.rel (0) target = $region9
    $region8: #{tpu_custom_call.1} parent=1 // pred_region
      _
    $region9: #{tpu_custom_call.1} parent=1 // pred_fallthru
      _
    // Predicated region
    $region10: #{tpu_custom_call.1} parent=1 // pred_check
      _
    $region11: #{tpu_custom_call.1} parent=1 // pred_check_branch
      %20 = sbr.rel (0) target = $region13
    $region12: #{tpu_custom_call.1} parent=1 // pred_region
      _
    $region13: #{tpu_custom_call.1} parent=1 // pred_fallthru
      _
    // Predicated region
    $region14: #{tpu_custom_call.1} parent=1 // pred_check
      _
    $region15: #{tpu_custom_call.1} parent=1 // pred_check_branch
      %22 = sbr.rel (0) target = $region17
    $region16: #{tpu_custom_call.1} parent=1 // pred_region
      _
    $region17: #{tpu_custom_call.1} parent=1 // pred_fallthru
      _
    // Predicated region
    $region18: #{tpu_custom_call.1} parent=1 // pred_check
      _
    $region19: #{tpu_custom_call.1} parent=1 // pred_check_branch
      %24 = sbr.rel (0) target = $region21
    $region20: #{tpu_custom_call.1} parent=1 // pred_region
      _
    $region21: #{tpu_custom_call.1} parent=1 // pred_fallthru
      _
    // Predicated region
    $region22: #{tpu_custom_call.1} parent=1 // pred_check
      _
    $region23: #{tpu_custom_call.1} parent=1 // pred_check_branch
      %26 = sbr.rel (0) target = $region25
    $region24: #{tpu_custom_call.1} parent=1 // pred_region
      _
    $region25: #{tpu_custom_call.1} parent=1 // pred_fallthru
      _
    // Predicated region
    $region26: #{tpu_custom_call.1} parent=1 // pred_check
      _
    $region27: #{tpu_custom_call.1} parent=1 // pred_check_branch
      %28 = sbr.rel (0) target = $region29
    $region28: #{tpu_custom_call.1} parent=1 // pred_region
      _
    $region29: #{tpu_custom_call.1} parent=1 // pred_fallthru
      _
    %v29 = vld [vmem:[%s0] sm:$0xf]
    %v30 = vld [vmem:[%s1] sm:$0xff]
    %v31 = vld [vmem:[%s1 + $0x8] sm:$0xff]
    %v32 = vld [vmem:[%s1 + $0x10] sm:$0xff]
    %v33 = vld [vmem:[%s1 + $0x18] sm:$0xff]
    %v34 = vld [vmem:[%s2] sm:$0xff]
    %v35 = vld [vmem:[%s2 + $0x8] sm:$0xff]
    %v36 = vld [vmem:[%s2 + $0x10] sm:$0xff]
    %v37 = vld [vmem:[%s2 + $0x18] sm:$0xff]
    %39 = vset.pattern.permute.xlu0 0
    %40 = vperm.xlu0 %39, %v30
    %v41 = vpop.permute.xlu0 %40
    %44 = vset.pattern.permute.xlu0 0
    %45 = vperm.xlu0 %44, %v31
    %v46 = vpop.permute.xlu0 %45
    %49 = vset.pattern.permute.xlu0 0
    %50 = vperm.xlu0 %49, %v32
    %v51 = vpop.permute.xlu0 %50
    %54 = vset.pattern.permute.xlu0 0
    %55 = vperm.xlu0 %54, %v33
    %v56 = vpop.permute.xlu0 %55
    %v59 = vperm.slane %v29, 0
    %v60 = vperm.slane %v29, 2
    %v63 = vperm.slane %v59, 0
    %v64 = vperm.slane %v60, 0
    %v65 = vmul.f32 %v41, %v63
    %v66 = vmul.f32 %v41, %v64
    %v67 = vmul.f32 %v46, %v63
    %v68 = vmul.f32 %v46, %v64
    %v69 = vmul.f32 %v51, %v63
    %v70 = vmul.f32 %v51, %v64
    %v71 = vmul.f32 %v56, %v63
    %v72 = vmul.f32 %v56, %v64
    %74 = vset.pattern.permute.xlu0 0
    %75 = vperm.xlu0 %74, %v34
    %v76 = vpop.permute.xlu0 %75
    %79 = vset.pattern.permute.xlu0 0
    %80 = vperm.xlu0 %79, %v35
    %v81 = vpop.permute.xlu0 %80
    %84 = vset.pattern.permute.xlu0 0
    %85 = vperm.xlu0 %84, %v36
    %v86 = vpop.permute.xlu0 %85
    %89 = vset.pattern.permute.xlu0 0
    %90 = vperm.xlu0 %89, %v37
    %v91 = vpop.permute.xlu0 %90
    %v93 = vadd.f32 %v76, %v65
    %v94 = vadd.f32 %v76, %v66
    %v95 = vadd.f32 %v81, %v67
    %v96 = vadd.f32 %v81, %v68
    %v97 = vadd.f32 %v86, %v69
    %v98 = vadd.f32 %v86, %v70
    %v99 = vadd.f32 %v91, %v71
    %v100 = vadd.f32 %v91, %v72
    %101 = vset.pattern.permute.xlu0 1
    %102 = vperm.xlu0 %101, %v30
    %v103 = vpop.permute.xlu0 %102
    %105 = vset.pattern.permute.xlu0 1
    %106 = vperm.xlu0 %105, %v31
    %v107 = vpop.permute.xlu0 %106
    %109 = vset.pattern.permute.xlu0 1
    %110 = vperm.xlu0 %109, %v32
    %v111 = vpop.permute.xlu0 %110
    %113 = vset.pattern.permute.xlu0 1
    %114 = vperm.xlu0 %113, %v33
    %v115 = vpop.permute.xlu0 %114
    %v117 = vperm.slane %v29, 1
    %v118 = vperm.slane %v29, 3
    %v121 = vperm.slane %v117, 1
    %v122 = vperm.slane %v118, 1
    %v123 = vmul.f32 %v103, %v121
    %v124 = vmul.f32 %v103, %v122
    %v125 = vmul.f32 %v107, %v121
    %v126 = vmul.f32 %v107, %v122
    %v127 = vmul.f32 %v111, %v121
    %v128 = vmul.f32 %v111, %v122
    %v129 = vmul.f32 %v115, %v121
    %v130 = vmul.f32 %v115, %v122
    %v131 = vadd.f32 %v93, %v123
    %v132 = vadd.f32 %v94, %v124
    %v133 = vadd.f32 %v95, %v125
    %v134 = vadd.f32 %v96, %v126
    %v135 = vadd.f32 %v97, %v127
    %v136 = vadd.f32 %v98, %v128
    %v137 = vadd.f32 %v99, %v129
    %v138 = vadd.f32 %v100, %v130
    %v139 = vtanh.pop %v131
    %v140 = vtanh.pop %v132
    %v141 = vtanh.pop %v133
    %v142 = vtanh.pop %v134
    %v143 = vtanh.pop %v135
    %v144 = vtanh.pop %v136
    %v145 = vtanh.pop %v137
    %v146 = vtanh.pop %v138
    %v147 = vld [vmem:[%s3] sm:$0xff]
    %v148 = vld [vmem:[%s3 + $0x8] sm:$0xff]
    %v149 = vld [vmem:[%s3 + $0x10] sm:$0xff]
    %v150 = vld [vmem:[%s3 + $0x18] sm:$0xff]
    %v151 = vld [vmem:[%s4] sm:$0xff]
    %v152 = vld [vmem:[%s4 + $0x8] sm:$0xff]
    %v153 = vld [vmem:[%s4 + $0x10] sm:$0xff]
    %v154 = vld [vmem:[%s4 + $0x18] sm:$0xff]
    %156 = vset.pattern.permute.xlu0 0
    %157 = vperm.xlu0 %156, %v151
    %v158 = vpop.permute.xlu0 %157
    %161 = vset.pattern.permute.xlu0 0
    %162 = vperm.xlu0 %161, %v152
    %v163 = vpop.permute.xlu0 %162
    %166 = vset.pattern.permute.xlu0 0
    %167 = vperm.xlu0 %166, %v153
    %v168 = vpop.permute.xlu0 %167
    %171 = vset.pattern.permute.xlu0 0
    %172 = vperm.xlu0 %171, %v154
    %v173 = vpop.permute.xlu0 %172
    %vm175 = vcmask 261120
    %v177 = vsel %vm175, %v147, 0
    %v180 = vsel %vm175, %v148, 0
    %v183 = vsel %vm175, %v149, 0
    %v186 = vsel %vm175, %v150, 0
    %188 = vmatpush.msra.mxu0 0.0
    %189 = vmatpush.msra.mxu0 0.0
    %190 = vmatpush.msra.mxu0 0.0
    %191 = vmatpush.msra.mxu0 0.0
    %192 = vmatpush.msra.mxu0 0.0
    %193 = vmatpush.msra.mxu0 0.0
    %194 = vmatpush.msra.mxu0 0.0
    %195 = vmatpush.msra.mxu0 0.0
    %196 = vmatpush.msra.mxu0 0.0
    %197 = vmatpush.msra.mxu0 0.0
    %198 = vmatpush.msra.mxu0 0.0
    %199 = vmatpush.msra.mxu0 0.0
    %200 = vmatpush.msra.mxu0 %v145
    %201 = vmatpush.msra.mxu0 %v143
    %202 = vmatpush.msra.mxu0 %v141
    %203 = vmatpush.msra.mxu0 %v139
    %204 = vmatmul.f32.gmra.mxu0 %v177
    %v205 = vpop.f32.mrf.mxu0
    %v206 = vadd.f32 %v158, %v205
    %207 = vmatmul.f32.gmra.mxu0 %v180
    %v208 = vpop.f32.mrf.mxu0
    %v209 = vadd.f32 %v163, %v208
    %210 = vmatmul.f32.gmra.mxu0 %v183
    %v211 = vpop.f32.mrf.mxu0
    %v212 = vadd.f32 %v168, %v211
    %213 = vmatmul.f32.gmra.mxu0 %v186
    %v214 = vpop.f32.mrf.mxu0
    %v215 = vadd.f32 %v173, %v214
    %216 = vdwg.mxu0
    %217 = vmatpush.msra.mxu0 0.0
    %218 = vmatpush.msra.mxu0 0.0
    %219 = vmatpush.msra.mxu0 0.0
    %220 = vmatpush.msra.mxu0 0.0
    %221 = vmatpush.msra.mxu0 0.0
    %222 = vmatpush.msra.mxu0 0.0
    %223 = vmatpush.msra.mxu0 0.0
    %224 = vmatpush.msra.mxu0 0.0
    %225 = vmatpush.msra.mxu0 0.0
    %226 = vmatpush.msra.mxu0 0.0
    %227 = vmatpush.msra.mxu0 0.0
    %228 = vmatpush.msra.mxu0 0.0
    %229 = vmatpush.msra.mxu0 %v146
    %230 = vmatpush.msra.mxu0 %v144
    %231 = vmatpush.msra.mxu0 %v142
    %232 = vmatpush.msra.mxu0 %v140
    %233 = vmatmul.f32.gmra.mxu0 %v177
    %v234 = vpop.f32.mrf.mxu0
    %v235 = vadd.f32 %v158, %v234
    %236 = vmatmul.f32.gmra.mxu0 %v180
    %v237 = vpop.f32.mrf.mxu0
    %v238 = vadd.f32 %v163, %v237
    %239 = vmatmul.f32.gmra.mxu0 %v183
    %v240 = vpop.f32.mrf.mxu0
    %v241 = vadd.f32 %v168, %v240
    %242 = vmatmul.f32.gmra.mxu0 %v186
    %v243 = vpop.f32.mrf.mxu0
    %v244 = vadd.f32 %v173, %v243
    %245 = vdwg.mxu0
    %v246 = vtanh.pop %v206
    %v247 = vtanh.pop %v235
    %v248 = vtanh.pop %v209
    %v249 = vtanh.pop %v238
    %v250 = vtanh.pop %v212
    %v251 = vtanh.pop %v241
    %v252 = vtanh.pop %v215
    %v253 = vtanh.pop %v244
    %s254 = scalar_lea.vmem %s3, 32
    %v255 = vld [vmem:[%s254] sm:$0xff]
    %v256 = vld [vmem:[%s254 + $0x8] sm:$0xff]
    %v257 = vld [vmem:[%s254 + $0x10] sm:$0xff]
    %v258 = vld [vmem:[%s254 + $0x18] sm:$0xff]
    %s259 = scalar_lea.vmem %s4, 32
    %v260 = vld [vmem:[%s259] sm:$0xff]
    %v261 = vld [vmem:[%s259 + $0x8] sm:$0xff]
    %v262 = vld [vmem:[%s259 + $0x10] sm:$0xff]
    %v263 = vld [vmem:[%s259 + $0x18] sm:$0xff]
    %265 = vset.pattern.permute.xlu0 0
    %266 = vperm.xlu0 %265, %v260
    %v267 = vpop.permute.xlu0 %266
    %270 = vset.pattern.permute.xlu0 0
    %271 = vperm.xlu0 %270, %v261
    %v272 = vpop.permute.xlu0 %271
    %275 = vset.pattern.permute.xlu0 0
    %276 = vperm.xlu0 %275, %v262
    %v277 = vpop.permute.xlu0 %276
    %280 = vset.pattern.permute.xlu0 0
    %281 = vperm.xlu0 %280, %v263
    %v282 = vpop.permute.xlu0 %281
    %v285 = vsel %vm175, %v255, 0
    %v288 = vsel %vm175, %v256, 0
    %v291 = vsel %vm175, %v257, 0
    %v294 = vsel %vm175, %v258, 0
    %296 = vmatpush.msra.mxu0 0.0
    %297 = vmatpush.msra.mxu0 0.0
    %298 = vmatpush.msra.mxu0 0.0
    %299 = vmatpush.msra.mxu0 0.0
    %300 = vmatpush.msra.mxu0 0.0
    %301 = vmatpush.msra.mxu0 0.0
    %302 = vmatpush.msra.mxu0 0.0
    %303 = vmatpush.msra.mxu0 0.0
    %304 = vmatpush.msra.mxu0 0.0
    %305 = vmatpush.msra.mxu0 0.0
    %306 = vmatpush.msra.mxu0 0.0
    %307 = vmatpush.msra.mxu0 0.0
    %308 = vmatpush.msra.mxu0 %v252
    %309 = vmatpush.msra.mxu0 %v250
    %310 = vmatpush.msra.mxu0 %v248
    %311 = vmatpush.msra.mxu0 %v246
    %312 = vmatmul.f32.gmra.mxu0 %v285
    %v313 = vpop.f32.mrf.mxu0
    %v314 = vadd.f32 %v267, %v313
    %315 = vmatmul.f32.gmra.mxu0 %v288
    %v316 = vpop.f32.mrf.mxu0
    %v317 = vadd.f32 %v272, %v316
    %318 = vmatmul.f32.gmra.mxu0 %v291
    %v319 = vpop.f32.mrf.mxu0
    %v320 = vadd.f32 %v277, %v319
    %321 = vmatmul.f32.gmra.mxu0 %v294
    %v322 = vpop.f32.mrf.mxu0
    %v323 = vadd.f32 %v282, %v322
    %324 = vdwg.mxu0
    %325 = vmatpush.msra.mxu0 0.0
    %326 = vmatpush.msra.mxu0 0.0
    %327 = vmatpush.msra.mxu0 0.0
    %328 = vmatpush.msra.mxu0 0.0
    %329 = vmatpush.msra.mxu0 0.0
    %330 = vmatpush.msra.mxu0 0.0
    %331 = vmatpush.msra.mxu0 0.0
    %332 = vmatpush.msra.mxu0 0.0
    %333 = vmatpush.msra.mxu0 0.0
    %334 = vmatpush.msra.mxu0 0.0
    %335 = vmatpush.msra.mxu0 0.0
    %336 = vmatpush.msra.mxu0 0.0
    %337 = vmatpush.msra.mxu0 %v253
    %338 = vmatpush.msra.mxu0 %v251
    %339 = vmatpush.msra.mxu0 %v249
    %340 = vmatpush.msra.mxu0 %v247
    %341 = vmatmul.f32.gmra.mxu0 %v285
    %v342 = vpop.f32.mrf.mxu0
    %v343 = vadd.f32 %v267, %v342
    %344 = vmatmul.f32.gmra.mxu0 %v288
    %v345 = vpop.f32.mrf.mxu0
    %v346 = vadd.f32 %v272, %v345
    %347 = vmatmul.f32.gmra.mxu0 %v291
    %v348 = vpop.f32.mrf.mxu0
    %v349 = vadd.f32 %v277, %v348
    %350 = vmatmul.f32.gmra.mxu0 %v294
    %v351 = vpop.f32.mrf.mxu0
    %v352 = vadd.f32 %v282, %v351
    %353 = vdwg.mxu0
    %v354 = vtanh.pop %v314
    %v355 = vtanh.pop %v343
    %v356 = vtanh.pop %v317
    %v357 = vtanh.pop %v346
    %v358 = vtanh.pop %v320
    %v359 = vtanh.pop %v349
    %v360 = vtanh.pop %v323
    %v361 = vtanh.pop %v352
    %v362 = vld [vmem:[%s5] sm:$0x1]
    %v363 = vld [vmem:[#allocation2] sm:$0x1]
    %365 = vset.pattern.permute.xlu0 0
    %366 = vperm.xlu0 %365, %v363
    %v367 = vpop.permute.xlu0 %366
    %v369 = vperm.slane %v367, 0
    %v371 = vsel %vm175, %v362, 0
    %373 = vmatpush.msra.mxu0 0.0
    %374 = vmatpush.msra.mxu0 0.0
    %375 = vmatpush.msra.mxu0 0.0
    %376 = vmatpush.msra.mxu0 0.0
    %377 = vmatpush.msra.mxu0 0.0
    %378 = vmatpush.msra.mxu0 0.0
    %379 = vmatpush.msra.mxu0 0.0
    %380 = vmatpush.msra.mxu0 0.0
    %381 = vmatpush.msra.mxu0 0.0
    %382 = vmatpush.msra.mxu0 0.0
    %383 = vmatpush.msra.mxu0 0.0
    %384 = vmatpush.msra.mxu0 0.0
    %385 = vmatpush.msra.mxu0 %v360
    %386 = vmatpush.msra.mxu0 %v358
    %387 = vmatpush.msra.mxu0 %v356
    %388 = vmatpush.msra.mxu0 %v354
    %389 = vmatmul.f32.gmra.mxu0 %v371
    %v390 = vpop.f32.mrf.mxu0
    %v391 = vadd.f32 %v369, %v390
    %392 = vdwg.mxu0
    %393 = vmatpush.msra.mxu0 0.0
    %394 = vmatpush.msra.mxu0 0.0
    %395 = vmatpush.msra.mxu0 0.0
    %396 = vmatpush.msra.mxu0 0.0
    %397 = vmatpush.msra.mxu0 0.0
    %398 = vmatpush.msra.mxu0 0.0
    %399 = vmatpush.msra.mxu0 0.0
    %400 = vmatpush.msra.mxu0 0.0
    %401 = vmatpush.msra.mxu0 0.0
    %402 = vmatpush.msra.mxu0 0.0
    %403 = vmatpush.msra.mxu0 0.0
    %404 = vmatpush.msra.mxu0 0.0
    %405 = vmatpush.msra.mxu0 %v361
    %406 = vmatpush.msra.mxu0 %v359
    %407 = vmatpush.msra.mxu0 %v357
    %408 = vmatpush.msra.mxu0 %v355
    %409 = vmatmul.f32.gmra.mxu0 %v371
    %v410 = vpop.f32.mrf.mxu0
    %v411 = vadd.f32 %v369, %v410
    %412 = vdwg.mxu0
    %v415 = vrot.slane %v411, 7
    %vm416 = vcmask 1040384
    %v417 = vsel %vm416, %v391, %v415
    %v419 = vlaneseq
    %vm420 = vcmp.ge.s32.totalorder %v419, 0
    %vm421 = vcmp.lt.s32.totalorder %v419, 256
    %vm422 = vmand %vm420, %vm421
    %423 = vst.msk [vmem:[#allocation3] sm:$0x3] %vm422, %v417
    // Predicated region
    $region30: #{tpu_custom_call.1} parent=1 // pred_check
      _
    $region31: #{tpu_custom_call.1} parent=1 // pred_check_branch
      %425 = sbr.rel (0) target = $region33
    $region32: #{tpu_custom_call.1} parent=1 // pred_region
      %427 = vsyncadd [#allocation4], 0
      %s429 = sshll.u32 [#allocation3], 4
      %s430 = int_to_ptr.vmem [resolvable:$true] %s429
      %s431 = sshll.u32 %s7, 4
      %s432 = int_to_ptr.hbm [resolvable:$true] %s431
      %434 = dma.vmem_to_hbm [thread:$0]  %s430, 32, %s432, [#allocation4]
    $region33: #{tpu_custom_call.1} parent=1 // pred_fallthru
      _
    // Predicated region
    $region34: #{tpu_custom_call.1} parent=1 // pred_check
      _
    $region35: #{tpu_custom_call.1} parent=1 // pred_check_branch
      %436 = sbr.rel (0) target = $region37
    $region36: #{tpu_custom_call.1} parent=1 // pred_region
      %438 = dma.done [#allocation4], 32
    $region37: #{tpu_custom_call.1} parent=1 // pred_fallthru
      _
    %439 = vsyncpa [#allocation4], 1

</llo_original>
